<compile_context>
chip_gen: v7x
topology: tpu7x:2x2x1
jax: 0.10.0
libtpu: 0.0.40
codegen_flags: <defaults>
</compile_context>

<pallas_src>
import functools

import jax
import jax.numpy as jnp
from jax.experimental import pallas as pl
from jax.experimental.pallas import tpu as pltpu

LOG_SIG_MAX = 2.0
LOG_SIG_MIN = -20.0


def _dot(a, b):
    return jnp.dot(a, b, preferred_element_type=jnp.float32)


def gaussian_policy_kernel(
    # graph data + aggregation operators (auto-DMA'd into VMEM)
    nodes_ref, edges_ref, glob_ref, a_io_ref, g_n_ref, g_e_ref,
    # block-1 weights / all biases (auto-DMA'd into VMEM)
    we1_ref, wn1_ref, wg1_ref, w1_agg_ref, b256_ref, b128_ref, bh_ref,
    # block-2 + head weights, left in HBM (manual overlapped DMA)
    w2_in_hbm, w2_agg_hbm, wh_hbm,
    # output: [B, 2A] = mean | clipped log_std
    out_ref,
    # scratch
    w2_in_vmem, w2_agg_vmem, wh_vmem, sem,
    *, n_total, num_actions,
):
    bf16 = jnp.bfloat16

    # ---- kick off block-2 / head weight prefetch; hide it under block-1 MXU work
    cp_in = pltpu.make_async_copy(w2_in_hbm, w2_in_vmem, sem.at[0])
    cp_agg = pltpu.make_async_copy(w2_agg_hbm, w2_agg_vmem, sem.at[1])
    cp_h = pltpu.make_async_copy(wh_hbm, wh_vmem, sem.at[2])
    cp_in.start()
    cp_agg.start()
    cp_h.start()

    nodes = nodes_ref[...].astype(bf16)
    edges = edges_ref[...].astype(bf16)
    glob = glob_ref[...].astype(bf16)
    a_io = a_io_ref[...]          # bf16 [2N, E]
    g_n = g_n_ref[...]            # bf16 [B, N]
    g_e = g_e_ref[...]            # bf16 [B, E]

    # block-1 packed weights (bf16) and biases (f32)
    win1 = w1_agg_ref[0:256, :]
    wout1 = w1_agg_ref[256:512, :]
    wgn1 = w1_agg_ref[512:768, :]
    wge1 = w1_agg_ref[768:1024, :]
    be1 = b256_ref[0:1, :]
    bn1 = b256_ref[1:2, :]
    bg1 = b256_ref[2:3, :]

    # ---- block 1 (width 256) ----
    # EdgeLinear + ReLU
    e1 = jnp.maximum(_dot(edges, we1_ref[...]) + be1, 0.0)          # [E, 256] f32
    e1b = e1.astype(bf16)
    # one stacked aggregation matmul gives avg(in edges) and avg(out edges)
    io1 = _dot(a_io, e1b)                                           # [2N, 256] f32
    inc1 = io1[:n_total].astype(bf16)
    out1 = io1[n_total:].astype(bf16)
    # NodeLinear + ReLU
    n1 = jnp.maximum(
        _dot(nodes, wn1_ref[...]) + _dot(inc1, win1) + _dot(out1, wout1) + bn1, 0.0)
    n1b = n1.astype(bf16)
    # GlobalLinear + ReLU
    gn1 = _dot(g_n, n1b).astype(bf16)
    ge1 = _dot(g_e, e1b).astype(bf16)
    u1 = jnp.maximum(
        _dot(glob, wg1_ref[...]) + _dot(gn1, wgn1) + _dot(ge1, wge1) + bg1, 0.0)
    u1b = u1.astype(bf16)

    # ---- block-2 weights must be resident now ----
    cp_in.wait()
    cp_agg.wait()
    cp_h.wait()

    we2 = w2_in_vmem[0:256, :]
    wn2 = w2_in_vmem[256:512, :]
    wg2 = w2_in_vmem[512:768, :]
    win2 = w2_agg_vmem[0:128, :]
    wout2 = w2_agg_vmem[128:256, :]
    wgn2 = w2_agg_vmem[256:384, :]
    wge2 = w2_agg_vmem[384:512, :]
    be2 = b128_ref[0:1, :]
    bn2 = b128_ref[1:2, :]
    bg2 = b128_ref[2:3, :]

    # ---- block 2 (width 128) ----
    e2 = jnp.maximum(_dot(e1b, we2) + be2, 0.0)
    e2b = e2.astype(bf16)
    io2 = _dot(a_io, e2b)
    inc2 = io2[:n_total].astype(bf16)
    out2 = io2[n_total:].astype(bf16)
    n2 = jnp.maximum(
        _dot(n1b, wn2) + _dot(inc2, win2) + _dot(out2, wout2) + bn2, 0.0)
    n2b = n2.astype(bf16)
    gn2 = _dot(g_n, n2b).astype(bf16)
    ge2 = _dot(g_e, e2b).astype(bf16)
    u2 = jnp.maximum(
        _dot(u1b, wg2) + _dot(gn2, wgn2) + _dot(ge2, wge2) + bg2, 0.0)

    # ---- fused mean | log_std head on global features ----
    heads = _dot(u2.astype(bf16), wh_vmem[...]) + bh_ref[...]       # [B, 2A] f32
    col = jax.lax.broadcasted_iota(jnp.int32, heads.shape, 1)
    clipped = jnp.clip(heads, LOG_SIG_MIN, LOG_SIG_MAX)
    out_ref[...] = jnp.where(col >= num_actions, clipped, heads)    # clamp only log_std half


def gaussian_policy_forward(data, packed):
    """data: packed graph dict (see pack_data). packed: packed param dict (see pack_params)."""
    B = data["globals"].shape[0]
    n_total = data["nodes"].shape[0]
    two_a = packed["w_heads"].shape[1]
    A = two_a // 2

    kernel = functools.partial(
        gaussian_policy_kernel, n_total=n_total, num_actions=A)

    vmem = pl.BlockSpec(memory_space=pltpu.MemorySpace.VMEM)
    hbm = pl.BlockSpec(memory_space=pl.ANY)

    # Small problem: everything fits in VMEM, so run a single grid point and let
    # the kernel overlap block-2 weight DMA with block-1 compute.
    # TODO(synk): when batch / graph size grows, add a per-graph grid axis
    # (dimension_semantics=("parallel",)) so the aggregation matrices stay
    # block-diagonal per tile and v7x's second TensorCore is used.
    out = pl.pallas_call(
        kernel,
        out_shape=jax.ShapeDtypeStruct((B, two_a), jnp.float32),
        in_specs=[vmem] * 13 + [hbm] * 3,
        out_specs=vmem,
        scratch_shapes=[
            pltpu.VMEM(packed["w2_in"].shape, jnp.bfloat16),
            pltpu.VMEM(packed["w2_agg"].shape, jnp.bfloat16),
            pltpu.VMEM(packed["w_heads"].shape, jnp.bfloat16),
            pltpu.SemaphoreType.DMA((3,)),
        ],
    )(
        data["nodes"], data["edges"], data["globals"],
        data["a_io"], data["g_n"], data["g_e"],
        packed["we1"], packed["wn1"], packed["wg1"], packed["w1_agg"],
        packed["b256"], packed["b128"], packed["b_heads"],
        packed["w2_in"], packed["w2_agg"], packed["w_heads"],
    )
    return out[:, :A], out[:, A:]


# ----------------------------- parameter setup ------------------------------

def _xavier(key, shape):
    fan_in, fan_out = shape
    bound = (6.0 / (fan_in + fan_out)) ** 0.5
    return jax.random.uniform(key, shape, jnp.float32, -bound, bound)


def _bias(key, width):
    return jax.random.uniform(key, (1, width), jnp.float32, -0.05, 0.05)


def make_params(key, f_node, f_edge, f_glob, num_actions):
    ks = iter(jax.random.split(key, 64))
    p = {}
    # edge1: EdgeLinear(256, edge_features=f_edge)
    p["we1"], p["be1"] = _xavier(next(ks), (f_edge, 256)), _bias(next(ks), 256)
    # node1: NodeLinear(256, node=f_node, incoming=256, outgoing=256)
    p["wn1"] = _xavier(next(ks), (f_node, 256))
    p["win1"] = _xavier(next(ks), (256, 256))
    p["wout1"] = _xavier(next(ks), (256, 256))
    p["bn1"] = _bias(next(ks), 256)
    # global1: GlobalLinear(256, global=f_glob, node=256, edge=256)
    p["wg1"] = _xavier(next(ks), (f_glob, 256))
    p["wgn1"] = _xavier(next(ks), (256, 256))
    p["wge1"] = _xavier(next(ks), (256, 256))
    p["bg1"] = _bias(next(ks), 256)
    # edge2: EdgeLinear(128, edge_features=256)
    p["we2"], p["be2"] = _xavier(next(ks), (256, 128)), _bias(next(ks), 128)
    # node2: NodeLinear(128, node=256, incoming=128, outgoing=128)
    p["wn2"] = _xavier(next(ks), (256, 128))
    p["win2"] = _xavier(next(ks), (128, 128))
    p["wout2"] = _xavier(next(ks), (128, 128))
    p["bn2"] = _bias(next(ks), 128)
    # global2: GlobalLinear(128, global=256, node=128, edge=128)
    p["wg2"] = _xavier(next(ks), (256, 128))
    p["wgn2"] = _xavier(next(ks), (128, 128))
    p["wge2"] = _xavier(next(ks), (128, 128))
    p["bg2"] = _bias(next(ks), 128)
    # mean / log_std heads: GlobalLinear(num_actions, global_features=128)
    p["wm"], p["bm"] = _xavier(next(ks), (128, num_actions)), _bias(next(ks), num_actions)
    p["ws"], p["bs"] = _xavier(next(ks), (128, num_actions)), _bias(next(ks), num_actions)
    return p


def pack_params(p):
    """Pack / quantize params for the kernel: bf16 weights, consolidated slabs."""
    bf = lambda x: x.astype(jnp.bfloat16)
    return dict(
        we1=bf(p["we1"]), wn1=bf(p["wn1"]), wg1=bf(p["wg1"]),
        w1_agg=bf(jnp.concatenate([p["win1"], p["wout1"], p["wgn1"], p["wge1"]], 0)),
        b256=jnp.concatenate([p["be1"], p["bn1"], p["bg1"]], 0),
        b128=jnp.concatenate([p["be2"], p["bn2"], p["bg2"]], 0),
        b_heads=jnp.concatenate([p["bm"], p["bs"]], 1),
        w2_in=bf(jnp.concatenate([p["we2"], p["wn2"], p["wg2"]], 0)),
        w2_agg=bf(jnp.concatenate([p["win2"], p["wout2"], p["wgn2"], p["wge2"]], 0)),
        w_heads=bf(jnp.concatenate([p["wm"], p["ws"]], 1)),
    )
    # TODO(synk): on v7x quantize weight slabs to fp8 (int8 on v5e/v6e) for a
    # further 2x cut in weight HBM traffic.


def make_graph_batch(key, batch, nodes_per_graph, f_node, f_edge, f_glob):
    """Fixed topology per graph: 4 nodes, 8 directed edges (every node has 2 in / 2 out)."""
    senders_local = jnp.array([0, 1, 2, 3, 0, 1, 2, 3], jnp.int32)
    receivers_local = jnp.array([1, 2, 3, 0, 2, 3, 0, 1], jnp.int32)
    edges_per_graph = senders_local.shape[0]

    senders, receivers = [], []
    for b in range(batch):
        senders.append(senders_local + b * nodes_per_graph)
        receivers.append(receivers_local + b * nodes_per_graph)
    senders = jnp.concatenate(senders)
    receivers = jnp.concatenate(receivers)

    n_total = batch * nodes_per_graph
    e_total = batch * edges_per_graph

    k1, k2, k3 = jax.random.split(key, 3)
    nodes = jax.random.normal(k1, (n_total, f_node), jnp.float32)
    edges = jax.random.normal(k2, (e_total, f_edge), jnp.float32)
    globals_ = jax.random.normal(k3, (batch, f_glob), jnp.float32)

    # avg-aggregation matrices (host-side glue, plain JAX)
    # TODO(synk): at scale keep A_in/A_out block-diagonal per graph and tile the
    # grid per graph instead of materializing the dense [N, E] operator.
    recv_oh = jax.nn.one_hot(receivers, n_total, dtype=jnp.float32)  # [E, N]
    send_oh = jax.nn.one_hot(senders, n_total, dtype=jnp.float32)
    a_in = recv_oh.T
    a_in = a_in / jnp.maximum(a_in.sum(axis=1, keepdims=True), 1.0)
    a_out = send_oh.T
    a_out = a_out / jnp.maximum(a_out.sum(axis=1, keepdims=True), 1.0)

    node_graph = jnp.repeat(jnp.arange(batch), nodes_per_graph)
    edge_graph = jnp.repeat(jnp.arange(batch), edges_per_graph)
    g_n = jax.nn.one_hot(node_graph, batch, dtype=jnp.float32).T
    g_n = g_n / jnp.maximum(g_n.sum(axis=1, keepdims=True), 1.0)
    g_e = jax.nn.one_hot(edge_graph, batch, dtype=jnp.float32).T
    g_e = g_e / jnp.maximum(g_e.sum(axis=1, keepdims=True), 1.0)

    return dict(nodes=nodes, edges=edges, globals=globals_,
                a_in=a_in, a_out=a_out, g_n=g_n, g_e=g_e)


def pack_data(data):
    """Stack aggregation operators for the kernel (values 0/0.125/0.25/0.5 are bf16-exact)."""
    return dict(
        nodes=data["nodes"], edges=data["edges"], globals=data["globals"],
        a_io=jnp.concatenate([data["a_in"], data["a_out"]], 0).astype(jnp.bfloat16),
        g_n=data["g_n"].astype(jnp.bfloat16),
        g_e=data["g_e"].astype(jnp.bfloat16),
    )


def reference_forward(data, p):
    """Pure-JAX reference with the same bf16-weight / f32-accumulate recipe as the kernel."""
    bf = lambda x: x.astype(jnp.bfloat16)
    dotf = lambda a, b: jnp.dot(bf(a), bf(b), preferred_element_type=jnp.float32)
    nodes, edges, glob = data["nodes"], data["edges"], data["globals"]
    a_in, a_out, g_n, g_e = data["a_in"], data["a_out"], data["g_n"], data["g_e"]

    e1 = jax.nn.relu(dotf(edges, p["we1"]) + p["be1"])
    n1 = jax.nn.relu(dotf(nodes, p["wn1"]) + dotf(dotf(a_in, e1), p["win1"])
                     + dotf(dotf(a_out, e1), p["wout1"]) + p["bn1"])
    u1 = jax.nn.relu(dotf(glob, p["wg1"]) + dotf(dotf(g_n, n1), p["wgn1"])
                     + dotf(dotf(g_e, e1), p["wge1"]) + p["bg1"])
    e2 = jax.nn.relu(dotf(e1, p["we2"]) + p["be2"])
    n2 = jax.nn.relu(dotf(n1, p["wn2"]) + dotf(dotf(a_in, e2), p["win2"])
                     + dotf(dotf(a_out, e2), p["wout2"]) + p["bn2"])
    u2 = jax.nn.relu(dotf(u1, p["wg2"]) + dotf(dotf(g_n, n2), p["wgn2"])
                     + dotf(dotf(g_e, e2), p["wge2"]) + p["bg2"])
    mean = dotf(u2, p["wm"]) + p["bm"]
    log_std = jnp.clip(dotf(u2, p["ws"]) + p["bs"], LOG_SIG_MIN, LOG_SIG_MAX)
    return mean, log_std


if __name__ == "__main__":
    key = jax.random.PRNGKey(0)
    k_data, k_param = jax.random.split(key)

    BATCH = 2                 # number of graphs in the batch
    NODES_PER_GRAPH = 4
    F_NODE, F_EDGE, F_GLOB = 8, 8, 8
    NUM_ACTIONS = 4

    data = make_graph_batch(k_data, BATCH, NODES_PER_GRAPH, F_NODE, F_EDGE, F_GLOB)
    params = make_params(k_param, F_NODE, F_EDGE, F_GLOB, NUM_ACTIONS)

    kdata = pack_data(data)
    kparams = pack_params(params)

    mean, log_std = jax.block_until_ready(gaussian_policy_forward(kdata, kparams))

    ref_mean, ref_log_std = reference_forward(data, params)
    assert mean.shape == (BATCH, NUM_ACTIONS) and log_std.shape == (BATCH, NUM_ACTIONS)
    assert jnp.allclose(mean, ref_mean, atol=1e-2, rtol=1e-2)
    assert jnp.allclose(log_std, ref_log_std, atol=1e-2, rtol=1e-2)

    print("KERNEL_OK")
</pallas_src>

<mosaic_0001>
module attributes {stable_mosaic.version = 11 : i64} {
  func.func @gaussian_policy_kernel(%arg0: memref<8x8xf32, #tpu.memory_space<vmem>>, %arg1: memref<16x8xf32, #tpu.memory_space<vmem>>, %arg2: memref<2x8xf32, #tpu.memory_space<vmem>>, %arg3: memref<16x16xbf16, #tpu.memory_space<vmem>>, %arg4: memref<2x8xbf16, #tpu.memory_space<vmem>>, %arg5: memref<2x16xbf16, #tpu.memory_space<vmem>>, %arg6: memref<8x256xbf16, #tpu.memory_space<vmem>>, %arg7: memref<8x256xbf16, #tpu.memory_space<vmem>>, %arg8: memref<8x256xbf16, #tpu.memory_space<vmem>>, %arg9: memref<1024x256xbf16, #tpu.memory_space<vmem>>, %arg10: memref<3x256xf32, #tpu.memory_space<vmem>>, %arg11: memref<3x128xf32, #tpu.memory_space<vmem>>, %arg12: memref<1x8xf32, #tpu.memory_space<vmem>>, %arg13: memref<768x128xbf16, #tpu.memory_space<any>>, %arg14: memref<512x128xbf16, #tpu.memory_space<any>>, %arg15: memref<128x8xbf16, #tpu.memory_space<any>>, %arg16: memref<2x8xf32, #tpu.memory_space<vmem>>, %arg17: memref<768x128xbf16, #tpu.memory_space<vmem>>, %arg18: memref<512x128xbf16, #tpu.memory_space<vmem>>, %arg19: memref<128x8xbf16, #tpu.memory_space<vmem>>, %arg20: memref<3x!tpu.dma_semaphore, #tpu.memory_space<semaphore_mem>>) attributes {dimension_semantics = [], scalar_prefetch = 0 : i64, scratch_operands = 4 : i64, tpu.core_type = #tpu.core_type<tc>} {
    %c0_i32 = arith.constant 0 : i32
    %0 = tpu.memref_slice %arg20[%c0_i32] : memref<3x!tpu.dma_semaphore, #tpu.memory_space<semaphore_mem>> -> memref<1x!tpu.dma_semaphore, #tpu.memory_space<semaphore_mem>>
    %1 = tpu.memref_squeeze %0 : memref<1x!tpu.dma_semaphore, #tpu.memory_space<semaphore_mem>> -> memref<!tpu.dma_semaphore, #tpu.memory_space<semaphore_mem>>
    tpu.enqueue_dma source(%arg13 : memref<768x128xbf16, #tpu.memory_space<any>>) target(%arg17 : memref<768x128xbf16, #tpu.memory_space<vmem>>) target_semaphore(%1 : memref<!tpu.dma_semaphore, #tpu.memory_space<semaphore_mem>>)
    %c1_i32 = arith.constant 1 : i32
    %2 = tpu.memref_slice %arg20[%c1_i32] : memref<3x!tpu.dma_semaphore, #tpu.memory_space<semaphore_mem>> -> memref<1x!tpu.dma_semaphore, #tpu.memory_space<semaphore_mem>>
    %3 = tpu.memref_squeeze %2 : memref<1x!tpu.dma_semaphore, #tpu.memory_space<semaphore_mem>> -> memref<!tpu.dma_semaphore, #tpu.memory_space<semaphore_mem>>
    tpu.enqueue_dma source(%arg14 : memref<512x128xbf16, #tpu.memory_space<any>>) target(%arg18 : memref<512x128xbf16, #tpu.memory_space<vmem>>) target_semaphore(%3 : memref<!tpu.dma_semaphore, #tpu.memory_space<semaphore_mem>>)
    %c2_i32 = arith.constant 2 : i32
    %4 = tpu.memref_slice %arg20[%c2_i32] : memref<3x!tpu.dma_semaphore, #tpu.memory_space<semaphore_mem>> -> memref<1x!tpu.dma_semaphore, #tpu.memory_space<semaphore_mem>>
    %5 = tpu.memref_squeeze %4 : memref<1x!tpu.dma_semaphore, #tpu.memory_space<semaphore_mem>> -> memref<!tpu.dma_semaphore, #tpu.memory_space<semaphore_mem>>
    tpu.enqueue_dma source(%arg15 : memref<128x8xbf16, #tpu.memory_space<any>>) target(%arg19 : memref<128x8xbf16, #tpu.memory_space<vmem>>) target_semaphore(%5 : memref<!tpu.dma_semaphore, #tpu.memory_space<semaphore_mem>>)
    %c0 = arith.constant 0 : index
    %c0_0 = arith.constant 0 : index
    %6 = vector.load %arg0[%c0, %c0_0] : memref<8x8xf32, #tpu.memory_space<vmem>>, vector<8x8xf32>
    %7 = arith.truncf %6 : vector<8x8xf32> to vector<8x8xbf16>
    %c0_1 = arith.constant 0 : index
    %c0_2 = arith.constant 0 : index
    %8 = vector.load %arg1[%c0_1, %c0_2] : memref<16x8xf32, #tpu.memory_space<vmem>>, vector<16x8xf32>
    %9 = arith.truncf %8 : vector<16x8xf32> to vector<16x8xbf16>
    %c0_3 = arith.constant 0 : index
    %c0_4 = arith.constant 0 : index
    %10 = vector.load %arg2[%c0_3, %c0_4] : memref<2x8xf32, #tpu.memory_space<vmem>>, vector<2x8xf32>
    %11 = arith.truncf %10 : vector<2x8xf32> to vector<2x8xbf16>
    %c0_5 = arith.constant 0 : index
    %c0_6 = arith.constant 0 : index
    %12 = vector.load %arg3[%c0_5, %c0_6] : memref<16x16xbf16, #tpu.memory_space<vmem>>, vector<16x16xbf16>
    %c0_7 = arith.constant 0 : index
    %c0_8 = arith.constant 0 : index
    %13 = vector.load %arg4[%c0_7, %c0_8] : memref<2x8xbf16, #tpu.memory_space<vmem>>, vector<2x8xbf16>
    %c0_9 = arith.constant 0 : index
    %c0_10 = arith.constant 0 : index
    %14 = vector.load %arg5[%c0_9, %c0_10] : memref<2x16xbf16, #tpu.memory_space<vmem>>, vector<2x16xbf16>
    %c0_11 = arith.constant 0 : index
    %c0_12 = arith.constant 0 : index
    %15 = vector.load %arg9[%c0_11, %c0_12] : memref<1024x256xbf16, #tpu.memory_space<vmem>>, vector<256x256xbf16>
    %c256 = arith.constant 256 : index
    %c0_13 = arith.constant 0 : index
    %16 = vector.load %arg9[%c256, %c0_13] : memref<1024x256xbf16, #tpu.memory_space<vmem>>, vector<256x256xbf16>
    %c512 = arith.constant 512 : index
    %c0_14 = arith.constant 0 : index
    %17 = vector.load %arg9[%c512, %c0_14] : memref<1024x256xbf16, #tpu.memory_space<vmem>>, vector<256x256xbf16>
    %c768 = arith.constant 768 : index
    %c0_15 = arith.constant 0 : index
    %18 = vector.load %arg9[%c768, %c0_15] : memref<1024x256xbf16, #tpu.memory_space<vmem>>, vector<256x256xbf16>
    %c0_16 = arith.constant 0 : index
    %c0_17 = arith.constant 0 : index
    %19 = vector.load %arg10[%c0_16, %c0_17] : memref<3x256xf32, #tpu.memory_space<vmem>>, vector<1x256xf32>
    %c1 = arith.constant 1 : index
    %c0_18 = arith.constant 0 : index
    %20 = vector.load %arg10[%c1, %c0_18] : memref<3x256xf32, #tpu.memory_space<vmem>>, vector<1x256xf32>
    %c2 = arith.constant 2 : index
    %c0_19 = arith.constant 0 : index
    %21 = vector.load %arg10[%c2, %c0_19] : memref<3x256xf32, #tpu.memory_space<vmem>>, vector<1x256xf32>
    %c0_20 = arith.constant 0 : index
    %c0_21 = arith.constant 0 : index
    %22 = vector.load %arg6[%c0_20, %c0_21] : memref<8x256xbf16, #tpu.memory_space<vmem>>, vector<8x256xbf16>
    %cst = arith.constant dense<0.000000e+00> : vector<16x256xf32>
    %23 = tpu.matmul %9, %22, %cst {dimension_numbers = #tpu.dot_dimension_numbers<[1], [0], [0], [1], [0, 0, 1, 1], [], []>} : vector<16x8xbf16>, vector<8x256xbf16>, vector<16x256xf32> -> vector<16x256xf32>
    %24 = vector.broadcast %19 : vector<1x256xf32> to vector<16x256xf32>
    %25 = arith.addf %23, %24 : vector<16x256xf32>
    %cst_22 = arith.constant 0.000000e+00 : f32
    %26 = vector.broadcast %cst_22 : f32 to vector<16x256xf32>
    %27 = arith.maximumf %25, %26 : vector<16x256xf32>
    %28 = arith.truncf %27 : vector<16x256xf32> to vector<16x256xbf16>
    %cst_23 = arith.constant dense<0.000000e+00> : vector<16x256xf32>
    %29 = tpu.matmul %12, %28, %cst_23 {dimension_numbers = #tpu.dot_dimension_numbers<[1], [0], [0], [1], [0, 0, 1, 1], [], []>} : vector<16x16xbf16>, vector<16x256xbf16>, vector<16x256xf32> -> vector<16x256xf32>
    %30 = vector.extract_strided_slice %29 {offsets = [0, 0], sizes = [8, 256], strides = [1, 1]} : vector<16x256xf32> to vector<8x256xf32>
    %31 = arith.truncf %30 : vector<8x256xf32> to vector<8x256xbf16>
    %32 = vector.extract_strided_slice %29 {offsets = [8, 0], sizes = [8, 256], strides = [1, 1]} : vector<16x256xf32> to vector<8x256xf32>
    %33 = arith.truncf %32 : vector<8x256xf32> to vector<8x256xbf16>
    %c0_24 = arith.constant 0 : index
    %c0_25 = arith.constant 0 : index
    %34 = vector.load %arg7[%c0_24, %c0_25] : memref<8x256xbf16, #tpu.memory_space<vmem>>, vector<8x256xbf16>
    %cst_26 = arith.constant dense<0.000000e+00> : vector<8x256xf32>
    %35 = tpu.matmul %7, %34, %cst_26 {dimension_numbers = #tpu.dot_dimension_numbers<[1], [0], [0], [1], [0, 0, 1, 1], [], []>} : vector<8x8xbf16>, vector<8x256xbf16>, vector<8x256xf32> -> vector<8x256xf32>
    %cst_27 = arith.constant dense<0.000000e+00> : vector<8x256xf32>
    %36 = tpu.matmul %31, %15, %cst_27 {dimension_numbers = #tpu.dot_dimension_numbers<[1], [0], [0], [1], [0, 0, 1, 1], [], []>} : vector<8x256xbf16>, vector<256x256xbf16>, vector<8x256xf32> -> vector<8x256xf32>
    %37 = arith.addf %35, %36 : vector<8x256xf32>
    %cst_28 = arith.constant dense<0.000000e+00> : vector<8x256xf32>
    %38 = tpu.matmul %33, %16, %cst_28 {dimension_numbers = #tpu.dot_dimension_numbers<[1], [0], [0], [1], [0, 0, 1, 1], [], []>} : vector<8x256xbf16>, vector<256x256xbf16>, vector<8x256xf32> -> vector<8x256xf32>
    %39 = arith.addf %37, %38 : vector<8x256xf32>
    %40 = vector.broadcast %20 : vector<1x256xf32> to vector<8x256xf32>
    %41 = arith.addf %39, %40 : vector<8x256xf32>
    %cst_29 = arith.constant 0.000000e+00 : f32
    %42 = vector.broadcast %cst_29 : f32 to vector<8x256xf32>
    %43 = arith.maximumf %41, %42 : vector<8x256xf32>
    %44 = arith.truncf %43 : vector<8x256xf32> to vector<8x256xbf16>
    %cst_30 = arith.constant dense<0.000000e+00> : vector<2x256xf32>
    %45 = tpu.matmul %13, %44, %cst_30 {dimension_numbers = #tpu.dot_dimension_numbers<[1], [0], [0], [1], [0, 0, 1, 1], [], []>} : vector<2x8xbf16>, vector<8x256xbf16>, vector<2x256xf32> -> vector<2x256xf32>
    %46 = arith.truncf %45 : vector<2x256xf32> to vector<2x256xbf16>
    %cst_31 = arith.constant dense<0.000000e+00> : vector<2x256xf32>
    %47 = tpu.matmul %14, %28, %cst_31 {dimension_numbers = #tpu.dot_dimension_numbers<[1], [0], [0], [1], [0, 0, 1, 1], [], []>} : vector<2x16xbf16>, vector<16x256xbf16>, vector<2x256xf32> -> vector<2x256xf32>
    %48 = arith.truncf %47 : vector<2x256xf32> to vector<2x256xbf16>
    %c0_32 = arith.constant 0 : index
    %c0_33 = arith.constant 0 : index
    %49 = vector.load %arg8[%c0_32, %c0_33] : memref<8x256xbf16, #tpu.memory_space<vmem>>, vector<8x256xbf16>
    %cst_34 = arith.constant dense<0.000000e+00> : vector<2x256xf32>
    %50 = tpu.matmul %11, %49, %cst_34 {dimension_numbers = #tpu.dot_dimension_numbers<[1], [0], [0], [1], [0, 0, 1, 1], [], []>} : vector<2x8xbf16>, vector<8x256xbf16>, vector<2x256xf32> -> vector<2x256xf32>
    %cst_35 = arith.constant dense<0.000000e+00> : vector<2x256xf32>
    %51 = tpu.matmul %46, %17, %cst_35 {dimension_numbers = #tpu.dot_dimension_numbers<[1], [0], [0], [1], [0, 0, 1, 1], [], []>} : vector<2x256xbf16>, vector<256x256xbf16>, vector<2x256xf32> -> vector<2x256xf32>
    %52 = arith.addf %50, %51 : vector<2x256xf32>
    %cst_36 = arith.constant dense<0.000000e+00> : vector<2x256xf32>
    %53 = tpu.matmul %48, %18, %cst_36 {dimension_numbers = #tpu.dot_dimension_numbers<[1], [0], [0], [1], [0, 0, 1, 1], [], []>} : vector<2x256xbf16>, vector<256x256xbf16>, vector<2x256xf32> -> vector<2x256xf32>
    %54 = arith.addf %52, %53 : vector<2x256xf32>
    %55 = vector.broadcast %21 : vector<1x256xf32> to vector<2x256xf32>
    %56 = arith.addf %54, %55 : vector<2x256xf32>
    %cst_37 = arith.constant 0.000000e+00 : f32
    %57 = vector.broadcast %cst_37 : f32 to vector<2x256xf32>
    %58 = arith.maximumf %56, %57 : vector<2x256xf32>
    %59 = arith.truncf %58 : vector<2x256xf32> to vector<2x256xbf16>
    %c0_i32_38 = arith.constant 0 : i32
    %60 = tpu.memref_slice %arg20[%c0_i32_38] : memref<3x!tpu.dma_semaphore, #tpu.memory_space<semaphore_mem>> -> memref<1x!tpu.dma_semaphore, #tpu.memory_space<semaphore_mem>>
    %61 = tpu.memref_squeeze %60 : memref<1x!tpu.dma_semaphore, #tpu.memory_space<semaphore_mem>> -> memref<!tpu.dma_semaphore, #tpu.memory_space<semaphore_mem>>
    tpu.wait_dma2 semaphore(%61 : memref<!tpu.dma_semaphore, #tpu.memory_space<semaphore_mem>>) src(%arg13 : memref<768x128xbf16, #tpu.memory_space<any>>) dst(%arg17 : memref<768x128xbf16, #tpu.memory_space<vmem>>)
    %c1_i32_39 = arith.constant 1 : i32
    %62 = tpu.memref_slice %arg20[%c1_i32_39] : memref<3x!tpu.dma_semaphore, #tpu.memory_space<semaphore_mem>> -> memref<1x!tpu.dma_semaphore, #tpu.memory_space<semaphore_mem>>
    %63 = tpu.memref_squeeze %62 : memref<1x!tpu.dma_semaphore, #tpu.memory_space<semaphore_mem>> -> memref<!tpu.dma_semaphore, #tpu.memory_space<semaphore_mem>>
    tpu.wait_dma2 semaphore(%63 : memref<!tpu.dma_semaphore, #tpu.memory_space<semaphore_mem>>) src(%arg14 : memref<512x128xbf16, #tpu.memory_space<any>>) dst(%arg18 : memref<512x128xbf16, #tpu.memory_space<vmem>>)
    %c2_i32_40 = arith.constant 2 : i32
    %64 = tpu.memref_slice %arg20[%c2_i32_40] : memref<3x!tpu.dma_semaphore, #tpu.memory_space<semaphore_mem>> -> memref<1x!tpu.dma_semaphore, #tpu.memory_space<semaphore_mem>>
    %65 = tpu.memref_squeeze %64 : memref<1x!tpu.dma_semaphore, #tpu.memory_space<semaphore_mem>> -> memref<!tpu.dma_semaphore, #tpu.memory_space<semaphore_mem>>
    tpu.wait_dma2 semaphore(%65 : memref<!tpu.dma_semaphore, #tpu.memory_space<semaphore_mem>>) src(%arg15 : memref<128x8xbf16, #tpu.memory_space<any>>) dst(%arg19 : memref<128x8xbf16, #tpu.memory_space<vmem>>)
    %c0_41 = arith.constant 0 : index
    %c0_42 = arith.constant 0 : index
    %66 = vector.load %arg17[%c0_41, %c0_42] : memref<768x128xbf16, #tpu.memory_space<vmem>>, vector<256x128xbf16>
    %c256_43 = arith.constant 256 : index
    %c0_44 = arith.constant 0 : index
    %67 = vector.load %arg17[%c256_43, %c0_44] : memref<768x128xbf16, #tpu.memory_space<vmem>>, vector<256x128xbf16>
    %c512_45 = arith.constant 512 : index
    %c0_46 = arith.constant 0 : index
    %68 = vector.load %arg17[%c512_45, %c0_46] : memref<768x128xbf16, #tpu.memory_space<vmem>>, vector<256x128xbf16>
    %c0_47 = arith.constant 0 : index
    %c0_48 = arith.constant 0 : index
    %69 = vector.load %arg18[%c0_47, %c0_48] : memref<512x128xbf16, #tpu.memory_space<vmem>>, vector<128x128xbf16>
    %c128 = arith.constant 128 : index
    %c0_49 = arith.constant 0 : index
    %70 = vector.load %arg18[%c128, %c0_49] : memref<512x128xbf16, #tpu.memory_space<vmem>>, vector<128x128xbf16>
    %c256_50 = arith.constant 256 : index
    %c0_51 = arith.constant 0 : index
    %71 = vector.load %arg18[%c256_50, %c0_51] : memref<512x128xbf16, #tpu.memory_space<vmem>>, vector<128x128xbf16>
    %c384 = arith.constant 384 : index
    %c0_52 = arith.constant 0 : index
    %72 = vector.load %arg18[%c384, %c0_52] : memref<512x128xbf16, #tpu.memory_space<vmem>>, vector<128x128xbf16>
    %c0_53 = arith.constant 0 : index
    %c0_54 = arith.constant 0 : index
    %73 = vector.load %arg11[%c0_53, %c0_54] : memref<3x128xf32, #tpu.memory_space<vmem>>, vector<1x128xf32>
    %c1_55 = arith.constant 1 : index
    %c0_56 = arith.constant 0 : index
    %74 = vector.load %arg11[%c1_55, %c0_56] : memref<3x128xf32, #tpu.memory_space<vmem>>, vector<1x128xf32>
    %c2_57 = arith.constant 2 : index
    %c0_58 = arith.constant 0 : index
    %75 = vector.load %arg11[%c2_57, %c0_58] : memref<3x128xf32, #tpu.memory_space<vmem>>, vector<1x128xf32>
    %cst_59 = arith.constant dense<0.000000e+00> : vector<16x128xf32>
    %76 = tpu.matmul %28, %66, %cst_59 {dimension_numbers = #tpu.dot_dimension_numbers<[1], [0], [0], [1], [0, 0, 1, 1], [], []>} : vector<16x256xbf16>, vector<256x128xbf16>, vector<16x128xf32> -> vector<16x128xf32>
    %77 = vector.broadcast %73 : vector<1x128xf32> to vector<16x128xf32>
    %78 = arith.addf %76, %77 : vector<16x128xf32>
    %cst_60 = arith.constant 0.000000e+00 : f32
    %79 = vector.broadcast %cst_60 : f32 to vector<16x128xf32>
    %80 = arith.maximumf %78, %79 : vector<16x128xf32>
    %81 = arith.truncf %80 : vector<16x128xf32> to vector<16x128xbf16>
    %cst_61 = arith.constant dense<0.000000e+00> : vector<16x128xf32>
    %82 = tpu.matmul %12, %81, %cst_61 {dimension_numbers = #tpu.dot_dimension_numbers<[1], [0], [0], [1], [0, 0, 1, 1], [], []>} : vector<16x16xbf16>, vector<16x128xbf16>, vector<16x128xf32> -> vector<16x128xf32>
    %83 = vector.extract_strided_slice %82 {offsets = [0, 0], sizes = [8, 128], strides = [1, 1]} : vector<16x128xf32> to vector<8x128xf32>
    %84 = arith.truncf %83 : vector<8x128xf32> to vector<8x128xbf16>
    %85 = vector.extract_strided_slice %82 {offsets = [8, 0], sizes = [8, 128], strides = [1, 1]} : vector<16x128xf32> to vector<8x128xf32>
    %86 = arith.truncf %85 : vector<8x128xf32> to vector<8x128xbf16>
    %cst_62 = arith.constant dense<0.000000e+00> : vector<8x128xf32>
    %87 = tpu.matmul %44, %67, %cst_62 {dimension_numbers = #tpu.dot_dimension_numbers<[1], [0], [0], [1], [0, 0, 1, 1], [], []>} : vector<8x256xbf16>, vector<256x128xbf16>, vector<8x128xf32> -> vector<8x128xf32>
    %cst_63 = arith.constant dense<0.000000e+00> : vector<8x128xf32>
    %88 = tpu.matmul %84, %69, %cst_63 {dimension_numbers = #tpu.dot_dimension_numbers<[1], [0], [0], [1], [0, 0, 1, 1], [], []>} : vector<8x128xbf16>, vector<128x128xbf16>, vector<8x128xf32> -> vector<8x128xf32>
    %89 = arith.addf %87, %88 : vector<8x128xf32>
    %cst_64 = arith.constant dense<0.000000e+00> : vector<8x128xf32>
    %90 = tpu.matmul %86, %70, %cst_64 {dimension_numbers = #tpu.dot_dimension_numbers<[1], [0], [0], [1], [0, 0, 1, 1], [], []>} : vector<8x128xbf16>, vector<128x128xbf16>, vector<8x128xf32> -> vector<8x128xf32>
    %91 = arith.addf %89, %90 : vector<8x128xf32>
    %92 = vector.broadcast %74 : vector<1x128xf32> to vector<8x128xf32>
    %93 = arith.addf %91, %92 : vector<8x128xf32>
    %cst_65 = arith.constant 0.000000e+00 : f32
    %94 = vector.broadcast %cst_65 : f32 to vector<8x128xf32>
    %95 = arith.maximumf %93, %94 : vector<8x128xf32>
    %96 = arith.truncf %95 : vector<8x128xf32> to vector<8x128xbf16>
    %cst_66 = arith.constant dense<0.000000e+00> : vector<2x128xf32>
    %97 = tpu.matmul %13, %96, %cst_66 {dimension_numbers = #tpu.dot_dimension_numbers<[1], [0], [0], [1], [0, 0, 1, 1], [], []>} : vector<2x8xbf16>, vector<8x128xbf16>, vector<2x128xf32> -> vector<2x128xf32>
    %98 = arith.truncf %97 : vector<2x128xf32> to vector<2x128xbf16>
    %cst_67 = arith.constant dense<0.000000e+00> : vector<2x128xf32>
    %99 = tpu.matmul %14, %81, %cst_67 {dimension_numbers = #tpu.dot_dimension_numbers<[1], [0], [0], [1], [0, 0, 1, 1], [], []>} : vector<2x16xbf16>, vector<16x128xbf16>, vector<2x128xf32> -> vector<2x128xf32>
    %100 = arith.truncf %99 : vector<2x128xf32> to vector<2x128xbf16>
    %cst_68 = arith.constant dense<0.000000e+00> : vector<2x128xf32>
    %101 = tpu.matmul %59, %68, %cst_68 {dimension_numbers = #tpu.dot_dimension_numbers<[1], [0], [0], [1], [0, 0, 1, 1], [], []>} : vector<2x256xbf16>, vector<256x128xbf16>, vector<2x128xf32> -> vector<2x128xf32>
    %cst_69 = arith.constant dense<0.000000e+00> : vector<2x128xf32>
    %102 = tpu.matmul %98, %71, %cst_69 {dimension_numbers = #tpu.dot_dimension_numbers<[1], [0], [0], [1], [0, 0, 1, 1], [], []>} : vector<2x128xbf16>, vector<128x128xbf16>, vector<2x128xf32> -> vector<2x128xf32>
    %103 = arith.addf %101, %102 : vector<2x128xf32>
    %cst_70 = arith.constant dense<0.000000e+00> : vector<2x128xf32>
    %104 = tpu.matmul %100, %72, %cst_70 {dimension_numbers = #tpu.dot_dimension_numbers<[1], [0], [0], [1], [0, 0, 1, 1], [], []>} : vector<2x128xbf16>, vector<128x128xbf16>, vector<2x128xf32> -> vector<2x128xf32>
    %105 = arith.addf %103, %104 : vector<2x128xf32>
    %106 = vector.broadcast %75 : vector<1x128xf32> to vector<2x128xf32>
    %107 = arith.addf %105, %106 : vector<2x128xf32>
    %cst_71 = arith.constant 0.000000e+00 : f32
    %108 = vector.broadcast %cst_71 : f32 to vector<2x128xf32>
    %109 = arith.maximumf %107, %108 : vector<2x128xf32>
    %110 = arith.truncf %109 : vector<2x128xf32> to vector<2x128xbf16>
    %c0_72 = arith.constant 0 : index
    %c0_73 = arith.constant 0 : index
    %111 = vector.load %arg19[%c0_72, %c0_73] : memref<128x8xbf16, #tpu.memory_space<vmem>>, vector<128x8xbf16>
    %cst_74 = arith.constant dense<0.000000e+00> : vector<2x8xf32>
    %112 = tpu.matmul %110, %111, %cst_74 {dimension_numbers = #tpu.dot_dimension_numbers<[1], [0], [0], [1], [0, 0, 1, 1], [], []>} : vector<2x128xbf16>, vector<128x8xbf16>, vector<2x8xf32> -> vector<2x8xf32>
    %c0_75 = arith.constant 0 : index
    %c0_76 = arith.constant 0 : index
    %113 = vector.load %arg12[%c0_75, %c0_76] : memref<1x8xf32, #tpu.memory_space<vmem>>, vector<1x8xf32>
    %114 = vector.broadcast %113 : vector<1x8xf32> to vector<2x8xf32>
    %115 = arith.addf %112, %114 : vector<2x8xf32>
    %116 = tpu.iota {dimensions = array<i32: 1>} : vector<2x8xi32>
    %cst_77 = arith.constant -2.000000e+01 : f32
    %cst_78 = arith.constant 2.000000e+00 : f32
    %117 = vector.broadcast %cst_77 : f32 to vector<2x8xf32>
    %118 = arith.maximumf %117, %115 : vector<2x8xf32>
    %119 = vector.broadcast %cst_78 : f32 to vector<2x8xf32>
    %120 = arith.minimumf %119, %118 : vector<2x8xf32>
    %c4_i32 = arith.constant 4 : i32
    %121 = vector.broadcast %c4_i32 : i32 to vector<2x8xi32>
    %122 = arith.cmpi sge, %116, %121 : vector<2x8xi32>
    %123 = arith.select %122, %120, %115 : vector<2x8xi1>, vector<2x8xf32>
    %c0_79 = arith.constant 0 : index
    %c0_80 = arith.constant 0 : index
    %124 = vector.load %arg16[%c0_79, %c0_80] : memref<2x8xf32, #tpu.memory_space<vmem>>, vector<2x8xf32>
    tpu.vector_store %arg16[%c0_79, %c0_80], %123 {strides = array<i32>} : memref<2x8xf32, #tpu.memory_space<vmem>>, vector<2x8xf32>,
    return
  }
}

</mosaic_0001>

<llo_original>
// kernel: tpu_custom_call.1
$region0: #{tpu_custom_call.1}
  #allocation0 [shape = 'u32[]', space=smem, size = 0x4, offset = 0x4, fixed_abs, tag = 'smem constant byte address 0x4 - core index']
  #allocation1 [shape = 'u32[144,128]{1,0:T(1,128)}', space=vmem, size = 0x12000, scoped, tag = 'internal scratch']
  #allocation2 [shape = 'bf16[768,128]{1,0:T(16,128)(2,1)}', space=vmem, size = 0x30000, scoped, tag = 'scratch operand']
  #allocation3 [shape = 'bf16[512,128]{1,0:T(16,128)(2,1)}', space=vmem, size = 0x20000, scoped, tag = 'scratch operand']
  #allocation4 [shape = 'bf16[128,8]{1,0:T(16,128)(2,1)}', space=vmem, size = 0x8000, scoped, tag = 'scratch operand']
  #allocation5 [shape = 's32[3]{0}', space=sflag, size = 0xc, scoped, tag = 'scratch operand']
  #allocation10 [shape = 's32[]', space=sflag, size = 0x4, offset = 0, fixed_abs, tag = 'sflag constant byte address 0x0 - dummy sync flag']
  #allocation11 [shape = 's32[]', space=sflag, size = 0x4, offset = 0, fixed_abs, tag = 'sflag constant byte address 0x0 - dummy sync flag']
  #allocation12 [shape = 'u32[]', space=smem, size = 0x4, offset = 0x44, fixed_abs, tag = 'smem constant byte address 0x44 - assertion arg 0']
  #allocation13 [shape = 'u32[]', space=smem, size = 0x4, offset = 0x48, fixed_abs, tag = 'smem constant byte address 0x48 - assertion arg 1']
  #allocation14 [shape = 's32[]', space=sflag, size = 0x4, offset = 0, fixed_abs, tag = 'sflag constant byte address 0x0 - dummy sync flag']
  #allocation15 [shape = 's32[]', space=sflag, size = 0x4, offset = 0, fixed_abs, tag = 'sflag constant byte address 0x0 - dummy sync flag']
  #allocation16 [shape = 's32[]', space=sflag, size = 0x4, offset = 0, fixed_abs, tag = 'sflag constant byte address 0x0 - dummy sync flag']
  %s0 = inlined_call_operand.vmem [shape: f32[8,8], index: 0, kind: input, shape index: {}]
  %s1 = inlined_call_operand.vmem [shape: f32[16,8], index: 1, kind: input, shape index: {}]
  %s2 = inlined_call_operand.vmem [shape: f32[2,8], index: 2, kind: input, shape index: {}]
  %s3 = inlined_call_operand.vmem [shape: bf16[16,16], index: 3, kind: input, shape index: {}]
  %s4 = inlined_call_operand.vmem [shape: bf16[2,8], index: 4, kind: input, shape index: {}]
  %s5 = inlined_call_operand.vmem [shape: bf16[2,16], index: 5, kind: input, shape index: {}]
  %s6 = inlined_call_operand.vmem [shape: bf16[8,256], index: 6, kind: input, shape index: {}]
  %s7 = inlined_call_operand.vmem [shape: bf16[8,256], index: 7, kind: input, shape index: {}]
  %s8 = inlined_call_operand.vmem [shape: bf16[8,256], index: 8, kind: input, shape index: {}]
  %s9 = inlined_call_operand.hbm [shape: bf16[1024,256], index: 9, kind: input, shape index: {}]
  %s10 = inlined_call_operand.vmem [shape: f32[3,256], index: 10, kind: input, shape index: {}]
  %s11 = inlined_call_operand.vmem [shape: f32[3,128], index: 11, kind: input, shape index: {}]
  %s12 = inlined_call_operand.vmem [shape: f32[1,8], index: 12, kind: input, shape index: {}]
  %s13 = inlined_call_operand.hbm [shape: bf16[768,128], index: 13, kind: input, shape index: {}]
  %s14 = inlined_call_operand.hbm [shape: bf16[512,128], index: 14, kind: input, shape index: {}]
  %s15 = inlined_call_operand.vmem [shape: bf16[128,8], index: 15, kind: input, shape index: {}]
  %s16 = inlined_call_operand.hbm [shape: f32[2,8], index: 16, kind: output, shape index: {}]
  %s17 = sld [smem:[#allocation0]]
  $region108: #{tpu_custom_call.1} parent=0
    _
  %s19 = ssub.s32 1, %s17
  %s20 = scalar_select 0, %s19, %s17
  $region1: #{tpu_custom_call.1} parent=0
    #allocation6 [shape = 'u8[524288]{0}', space=vmem, size = 0x80000, scoped, tag = 'input window, operand 9, single buffered']
    #allocation7 [shape = 's32[1]{0}', space=sflag, size = 0x4, scoped, tag = 'scoped memory for tpu_custom_call.1']
    #allocation8 [shape = 's32[1]{0}', space=sflag, size = 0x4, scoped, tag = 'scoped memory for tpu_custom_call.1']
    #allocation9 [shape = 'u8[1024]{0}', space=vmem, size = 0x400, scoped, tag = 'output window, operand 0, single buffered']
    %21 = vsyncpa [#allocation7], 0
    %22 = vsyncpa [#allocation8], 0
    // Predicated region
    $region2: #{tpu_custom_call.1} parent=1 // pred_check
      _
    $region3: #{tpu_custom_call.1} parent=1 // pred_check_branch
      %24 = sbr.rel (0) target = $region5
    $region4: #{tpu_custom_call.1} parent=1 // pred_region
      _
    $region5: #{tpu_custom_call.1} parent=1 // pred_fallthru
      _
    // Predicated region
    $region6: #{tpu_custom_call.1} parent=1 // pred_check
      _
    $region7: #{tpu_custom_call.1} parent=1 // pred_check_branch
      %26 = sbr.rel (0) target = $region9
    $region8: #{tpu_custom_call.1} parent=1 // pred_region
      _
    $region9: #{tpu_custom_call.1} parent=1 // pred_fallthru
      _
    // Predicated region
    $region10: #{tpu_custom_call.1} parent=1 // pred_check
      _
    $region11: #{tpu_custom_call.1} parent=1 // pred_check_branch
      %28 = sbr.rel (0) target = $region13
    $region12: #{tpu_custom_call.1} parent=1 // pred_region
      _
    $region13: #{tpu_custom_call.1} parent=1 // pred_fallthru
      _
    // Predicated region
    $region14: #{tpu_custom_call.1} parent=1 // pred_check
      _
    $region15: #{tpu_custom_call.1} parent=1 // pred_check_branch
      %30 = sbr.rel (0) target = $region17
    $region16: #{tpu_custom_call.1} parent=1 // pred_region
      _
    $region17: #{tpu_custom_call.1} parent=1 // pred_fallthru
      _
    // Predicated region
    $region18: #{tpu_custom_call.1} parent=1 // pred_check
      _
    $region19: #{tpu_custom_call.1} parent=1 // pred_check_branch
      %32 = sbr.rel (0) target = $region21
    $region20: #{tpu_custom_call.1} parent=1 // pred_region
      _
    $region21: #{tpu_custom_call.1} parent=1 // pred_fallthru
      _
    // Predicated region
    $region22: #{tpu_custom_call.1} parent=1 // pred_check
      _
    $region23: #{tpu_custom_call.1} parent=1 // pred_check_branch
      %34 = sbr.rel (0) target = $region25
    $region24: #{tpu_custom_call.1} parent=1 // pred_region
      _
    $region25: #{tpu_custom_call.1} parent=1 // pred_fallthru
      _
    // Predicated region
    $region26: #{tpu_custom_call.1} parent=1 // pred_check
      _
    $region27: #{tpu_custom_call.1} parent=1 // pred_check_branch
      %36 = sbr.rel (0) target = $region29
    $region28: #{tpu_custom_call.1} parent=1 // pred_region
      _
    $region29: #{tpu_custom_call.1} parent=1 // pred_fallthru
      _
    // Predicated region
    $region30: #{tpu_custom_call.1} parent=1 // pred_check
      _
    $region31: #{tpu_custom_call.1} parent=1 // pred_check_branch
      %38 = sbr.rel (0) target = $region33
    $region32: #{tpu_custom_call.1} parent=1 // pred_region
      _
    $region33: #{tpu_custom_call.1} parent=1 // pred_fallthru
      _
    // Predicated region
    $region34: #{tpu_custom_call.1} parent=1 // pred_check
      _
    $region35: #{tpu_custom_call.1} parent=1 // pred_check_branch
      %40 = sbr.rel (0) target = $region37
    $region36: #{tpu_custom_call.1} parent=1 // pred_region
      _
    $region37: #{tpu_custom_call.1} parent=1 // pred_fallthru
      _
    // Predicated region
    $region38: #{tpu_custom_call.1} parent=1 // pred_check
      _
    $region39: #{tpu_custom_call.1} parent=1 // pred_check_branch
      %42 = sbr.rel (0) target = $region41
    $region40: #{tpu_custom_call.1} parent=1 // pred_region
      %s44 = ssub.s32 16384, 16384
      %45 = vsyncadd [#allocation7], %s44
      %s46 = sshll.u32 [#allocation6], 4
      %s47 = int_to_ptr.vmem [resolvable:$true] %s46
      %52 = dma.hbm_to_vmem [thread:$0]  %s9, 16384, %s47, [#allocation7], 128, 128, 8
    $region41: #{tpu_custom_call.1} parent=1 // pred_fallthru
      _
    // Predicated region
    $region42: #{tpu_custom_call.1} parent=1 // pred_check
      _
    $region43: #{tpu_custom_call.1} parent=1 // pred_check_branch
      %54 = sbr.rel (0) target = $region45
    $region44: #{tpu_custom_call.1} parent=1 // pred_region
      _
    $region45: #{tpu_custom_call.1} parent=1 // pred_fallthru
      _
    // Predicated region
    $region46: #{tpu_custom_call.1} parent=1 // pred_check
      _
    $region47: #{tpu_custom_call.1} parent=1 // pred_check_branch
      %56 = sbr.rel (0) target = $region49
    $region48: #{tpu_custom_call.1} parent=1 // pred_region
      _
    $region49: #{tpu_custom_call.1} parent=1 // pred_fallthru
      _
    // Predicated region
    $region50: #{tpu_custom_call.1} parent=1 // pred_check
      _
    $region51: #{tpu_custom_call.1} parent=1 // pred_check_branch
      %58 = sbr.rel (0) target = $region53
    $region52: #{tpu_custom_call.1} parent=1 // pred_region
      _
    $region53: #{tpu_custom_call.1} parent=1 // pred_fallthru
      _
    // Predicated region
    $region54: #{tpu_custom_call.1} parent=1 // pred_check
      _
    $region55: #{tpu_custom_call.1} parent=1 // pred_check_branch
      %60 = sbr.rel (0) target = $region57
    $region56: #{tpu_custom_call.1} parent=1 // pred_region
      %61 = dma.done [#allocation7], 16384
    $region57: #{tpu_custom_call.1} parent=1 // pred_fallthru
      _
    // Predicated region
    $region58: #{tpu_custom_call.1} parent=1 // pred_check
      _
    $region59: #{tpu_custom_call.1} parent=1 // pred_check_branch
      %64 = sbr.rel target = $region61
    $region60: #{tpu_custom_call.1} parent=1 // pred_region
      %65 = sst [smem:[#allocation12]] [#allocation11]
      %66 = sst [smem:[#allocation13]] [#allocation10]
    $region61: #{tpu_custom_call.1} parent=1 // pred_fallthru
      _
    %68 = shalt.err (0)
    %s70 = sshll.u32 [#allocation2], 4
    %s71 = int_to_ptr.vmem [resolvable:$true] %s70
    %73 = dma.hbm_to_vmem [thread:$0]  %s13, 6144, %s71, [#allocation5]
    %s74 = scalar_lea.sflag [#allocation5], 1
    // Predicated region
    $region62: #{tpu_custom_call.1} parent=1 // pred_check
      _
    $region63: #{tpu_custom_call.1} parent=1 // pred_check_branch
      %76 = sbr.rel target = $region65
    $region64: #{tpu_custom_call.1} parent=1 // pred_region
      %77 = sst [smem:[#allocation12]] [#allocation15]
      %78 = sst [smem:[#allocation13]] [#allocation14]
    $region65: #{tpu_custom_call.1} parent=1 // pred_fallthru
      _
    %80 = shalt.err (0)
    %s82 = sshll.u32 [#allocation3], 4
    %s83 = int_to_ptr.vmem [resolvable:$true] %s82
    %85 = dma.hbm_to_vmem [thread:$0]  %s14, 4096, %s83, %s74
    %s86 = scalar_lea.sflag [#allocation5], 2
    %p88 = scmp.lt.u32.totalorder 64, 8
    %p89 = pneg %p88
    // Predicated region
    $region66: #{tpu_custom_call.1} parent=1 // pred_check
      _
    $region67: #{tpu_custom_call.1} parent=1 // pred_check_branch
      %91 = sbr.rel (%p88) target = $region69
    $region68: #{tpu_custom_call.1} parent=1 // pred_region
      %s106 = sand.u32 64, 7
      %p107 = scmp.eq.s32.totalorder %s106, 0
      // Predicated region
      $region81: #{tpu_custom_call.1} parent=68 // pred_check
        %p108 = pneg %p107
      $region82: #{tpu_custom_call.1} parent=68 // pred_check_branch
        %110 = sbr.rel (%p108) target = $region84
      $region83: #{tpu_custom_call.1} parent=68 // pred_region
        loop: start=0, step=1, limit=1
        $region85: #{tpu_custom_call.1} parent=83 // loop_pre_header
          _
        $region86: #{tpu_custom_call.1} parent=83 // loop_header
          %s112 = sphi 0, %s116
          %p113 = scmp.ge.s32.totalorder %s112, 1
          %s117 = sphi %s15, %s15
          %s118 = sphi [#allocation4], [#allocation4]
        $region87: #{tpu_custom_call.1} parent=83 // loop_header_branch
          %115 = sbr.rel (%p113) target = $region91
        $region88: #{tpu_custom_call.1} parent=83 // loop_body
          %v119 = vld [vmem:[%s117] sm:$0xff]
          %120 = vst [vmem:[%s118] sm:$0xff] %v119
          %v121 = vld [vmem:[%s117 + $0x8] sm:$0xff]
          %122 = vst [vmem:[%s118 + $0x8] sm:$0xff] %v121
          %v123 = vld [vmem:[%s117 + $0x10] sm:$0xff]
          %124 = vst [vmem:[%s118 + $0x10] sm:$0xff] %v123
          %v125 = vld [vmem:[%s117 + $0x18] sm:$0xff]
          %126 = vst [vmem:[%s118 + $0x18] sm:$0xff] %v125
          %v127 = vld [vmem:[%s117 + $0x20] sm:$0xff]
          %128 = vst [vmem:[%s118 + $0x20] sm:$0xff] %v127
          %v129 = vld [vmem:[%s117 + $0x28] sm:$0xff]
          %130 = vst [vmem:[%s118 + $0x28] sm:$0xff] %v129
          %v131 = vld [vmem:[%s117 + $0x30] sm:$0xff]
          %132 = vst [vmem:[%s118 + $0x30] sm:$0xff] %v131
          %v133 = vld [vmem:[%s117 + $0x38] sm:$0xff]
          %134 = vst [vmem:[%s118 + $0x38] sm:$0xff] %v133
        $region89: #{tpu_custom_call.1} parent=83 // loop_footer
          %s116 = sadd.s32 1, %s112
        $region90: #{tpu_custom_call.1} parent=83 // loop_footer_branch
          %111 = sbr.rel target = $region86
        $region91: #{tpu_custom_call.1} parent=83 // loop_exit
          _
      $region84: #{tpu_custom_call.1} parent=68 // pred_fallthru
        _
      %p135 = pneg %p107
      // Predicated region
      $region92: #{tpu_custom_call.1} parent=68 // pred_check
        _
      $region93: #{tpu_custom_call.1} parent=68 // pred_check_branch
        %137 = sbr.rel (%p107) target = $region95
      $region94: #{tpu_custom_call.1} parent=68 // pred_region
        %s138 = sand.u32 64, 7
      $region95: #{tpu_custom_call.1} parent=68 // pred_fallthru
        _
    $region69: #{tpu_custom_call.1} parent=1 // pred_fallthru
      _
    // Predicated region
    $region70: #{tpu_custom_call.1} parent=1 // pred_check
      %p92 = pneg %p88
    $region71: #{tpu_custom_call.1} parent=1 // pred_check_branch
      %94 = sbr.rel (%p92) target = $region73
    $region72: #{tpu_custom_call.1} parent=1 // pred_region
      %s95 = sshllo.u32 0, 64
      loop: start=0, step=1, limit=1
      $region74: #{tpu_custom_call.1} parent=72 // loop_pre_header
        _
      $region75: #{tpu_custom_call.1} parent=72 // loop_header
        %s97 = sphi 0, %s101
        %p98 = scmp.ge.s32.totalorder %s97, 1
        %s102 = sphi %s15, %s15
        %s103 = sphi [#allocation4], [#allocation4]
      $region76: #{tpu_custom_call.1} parent=72 // loop_header_branch
        %100 = sbr.rel (%p98) target = $region80
      $region77: #{tpu_custom_call.1} parent=72 // loop_body
        %v104 = vld [vmem:[%s102] sm:%s95]
        %105 = vst [vmem:[%s103] sm:%s95] %v104
      $region78: #{tpu_custom_call.1} parent=72 // loop_footer
        %s101 = sadd.s32 1, %s97
      $region79: #{tpu_custom_call.1} parent=72 // loop_footer_branch
        %96 = sbr.rel target = $region75
      $region80: #{tpu_custom_call.1} parent=72 // loop_exit
        _
    $region73: #{tpu_custom_call.1} parent=1 // pred_fallthru
      _
    // Predicated region
    $region96: #{tpu_custom_call.1} parent=1 // pred_check
      _
    $region97: #{tpu_custom_call.1} parent=1 // pred_check_branch
      %141 = sbr.rel (0) target = $region99
    $region98: #{tpu_custom_call.1} parent=1 // pred_region
      %142 = vsyncadd %s86, 1024
    $region99: #{tpu_custom_call.1} parent=1 // pred_fallthru
      _
    %v143 = vld [vmem:[%s0] sm:$0xff]
    %v144 = vpack.c.bf16 %v143, %v143
    %v145 = vld [vmem:[%s1] sm:$0xff]
    %v146 = vld [vmem:[%s1 + $0x8] sm:$0xff]
    %v147 = vpack.c.bf16 %v146, %v145
    %v148 = vld [vmem:[%s2] sm:$0x3]
    %v149 = vpack.c.bf16 %v148, %v148
    %v150 = vld [vmem:[%s3] sm:$0xf]
    %v151 = vld [vmem:[%s3 + $0x4] sm:$0xf]
    %v152 = vld [vmem:[%s4] sm:$0x1]
    %v153 = vld [vmem:[%s5] sm:$0x1]
    %v154 = vld [vmem:[#allocation6] sm:$0xff]
    %v155 = vld [vmem:[#allocation6 + $0x8] sm:$0xff]
    %v156 = vld [vmem:[#allocation6 + $0x10] sm:$0xff]
    %v157 = vld [vmem:[#allocation6 + $0x18] sm:$0xff]
    %v158 = vld [vmem:[#allocation6 + $0x20] sm:$0xff]
    %v159 = vld [vmem:[#allocation6 + $0x28] sm:$0xff]
    %v160 = vld [vmem:[#allocation6 + $0x30] sm:$0xff]
    %v161 = vld [vmem:[#allocation6 + $0x38] sm:$0xff]
    %v162 = vld [vmem:[#allocation6 + $0x40] sm:$0xff]
    %v163 = vld [vmem:[#allocation6 + $0x48] sm:$0xff]
    %v164 = vld [vmem:[#allocation6 + $0x50] sm:$0xff]
    %v165 = vld [vmem:[#allocation6 + $0x58] sm:$0xff]
    %v166 = vld [vmem:[#allocation6 + $0x60] sm:$0xff]
    %v167 = vld [vmem:[#allocation6 + $0x68] sm:$0xff]
    %v168 = vld [vmem:[#allocation6 + $0x70] sm:$0xff]
    %v169 = vld [vmem:[#allocation6 + $0x78] sm:$0xff]
    %v170 = vld [vmem:[#allocation6 + $0x80] sm:$0xff]
    %v171 = vld [vmem:[#allocation6 + $0x88] sm:$0xff]
    %v172 = vld [vmem:[#allocation6 + $0x90] sm:$0xff]
    %v173 = vld [vmem:[#allocation6 + $0x98] sm:$0xff]
    %v174 = vld [vmem:[#allocation6 + $0xa0] sm:$0xff]
    %v175 = vld [vmem:[#allocation6 + $0xa8] sm:$0xff]
    %v176 = vld [vmem:[#allocation6 + $0xb0] sm:$0xff]
    %v177 = vld [vmem:[#allocation6 + $0xb8] sm:$0xff]
    %v178 = vld [vmem:[#allocation6 + $0xc0] sm:$0xff]
    %v179 = vld [vmem:[#allocation6 + $0xc8] sm:$0xff]
    %v180 = vld [vmem:[#allocation6 + $0xd0] sm:$0xff]
    %v181 = vld [vmem:[#allocation6 + $0xd8] sm:$0xff]
    %v182 = vld [vmem:[#allocation6 + $0xe0] sm:$0xff]
    %v183 = vld [vmem:[#allocation6 + $0xe8] sm:$0xff]
    %v184 = vld [vmem:[#allocation6 + $0xf0] sm:$0xff]
    %v185 = vld [vmem:[#allocation6 + $0xf8] sm:$0xff]
    %v186 = vld [vmem:[#allocation6 + $0x100] sm:$0xff]
    %v187 = vld [vmem:[#allocation6 + $0x108] sm:$0xff]
    %v188 = vld [vmem:[#allocation6 + $0x110] sm:$0xff]
    %v189 = vld [vmem:[#allocation6 + $0x118] sm:$0xff]
    %v190 = vld [vmem:[#allocation6 + $0x120] sm:$0xff]
    %v191 = vld [vmem:[#allocation6 + $0x128] sm:$0xff]
    %v192 = vld [vmem:[#allocation6 + $0x130] sm:$0xff]
    %v193 = vld [vmem:[#allocation6 + $0x138] sm:$0xff]
    %v194 = vld [vmem:[#allocation6 + $0x140] sm:$0xff]
    %v195 = vld [vmem:[#allocation6 + $0x148] sm:$0xff]
    %v196 = vld [vmem:[#allocation6 + $0x150] sm:$0xff]
    %v197 = vld [vmem:[#allocation6 + $0x158] sm:$0xff]
    %v198 = vld [vmem:[#allocation6 + $0x160] sm:$0xff]
    %v199 = vld [vmem:[#allocation6 + $0x168] sm:$0xff]
    %v200 = vld [vmem:[#allocation6 + $0x170] sm:$0xff]
    %v201 = vld [vmem:[#allocation6 + $0x178] sm:$0xff]
    %v202 = vld [vmem:[#allocation6 + $0x180] sm:$0xff]
    %v203 = vld [vmem:[#allocation6 + $0x188] sm:$0xff]
    %v204 = vld [vmem:[#allocation6 + $0x190] sm:$0xff]
    %v205 = vld [vmem:[#allocation6 + $0x198] sm:$0xff]
    %v206 = vld [vmem:[#allocation6 + $0x1a0] sm:$0xff]
    %v207 = vld [vmem:[#allocation6 + $0x1a8] sm:$0xff]
    %v208 = vld [vmem:[#allocation6 + $0x1b0] sm:$0xff]
    %v209 = vld [vmem:[#allocation6 + $0x1b8] sm:$0xff]
    %v210 = vld [vmem:[#allocation6 + $0x1c0] sm:$0xff]
    %v211 = vld [vmem:[#allocation6 + $0x1c8] sm:$0xff]
    %v212 = vld [vmem:[#allocation6 + $0x1d0] sm:$0xff]
    %v213 = vld [vmem:[#allocation6 + $0x1d8] sm:$0xff]
    %v214 = vld [vmem:[#allocation6 + $0x1e0] sm:$0xff]
    %v215 = vld [vmem:[#allocation6 + $0x1e8] sm:$0xff]
    %v216 = vld [vmem:[#allocation6 + $0x1f0] sm:$0xff]
    %v217 = vld [vmem:[#allocation6 + $0x1f8] sm:$0xff]
    %v218 = vld [vmem:[#allocation6 + $0x200] sm:$0xff]
    %v219 = vld [vmem:[#allocation6 + $0x208] sm:$0xff]
    %v220 = vld [vmem:[#allocation6 + $0x210] sm:$0xff]
    %v221 = vld [vmem:[#allocation6 + $0x218] sm:$0xff]
    %v222 = vld [vmem:[#allocation6 + $0x220] sm:$0xff]
    %v223 = vld [vmem:[#allocation6 + $0x228] sm:$0xff]
    %v224 = vld [vmem:[#allocation6 + $0x230] sm:$0xff]
    %v225 = vld [vmem:[#allocation6 + $0x238] sm:$0xff]
    %v226 = vld [vmem:[#allocation6 + $0x240] sm:$0xff]
    %v227 = vld [vmem:[#allocation6 + $0x248] sm:$0xff]
    %v228 = vld [vmem:[#allocation6 + $0x250] sm:$0xff]
    %v229 = vld [vmem:[#allocation6 + $0x258] sm:$0xff]
    %v230 = vld [vmem:[#allocation6 + $0x260] sm:$0xff]
    %v231 = vld [vmem:[#allocation6 + $0x268] sm:$0xff]
    %v232 = vld [vmem:[#allocation6 + $0x270] sm:$0xff]
    %v233 = vld [vmem:[#allocation6 + $0x278] sm:$0xff]
    %v234 = vld [vmem:[#allocation6 + $0x280] sm:$0xff]
    %v235 = vld [vmem:[#allocation6 + $0x288] sm:$0xff]
    %v236 = vld [vmem:[#allocation6 + $0x290] sm:$0xff]
    %v237 = vld [vmem:[#allocation6 + $0x298] sm:$0xff]
    %v238 = vld [vmem:[#allocation6 + $0x2a0] sm:$0xff]
    %v239 = vld [vmem:[#allocation6 + $0x2a8] sm:$0xff]
    %v240 = vld [vmem:[#allocation6 + $0x2b0] sm:$0xff]
    %v241 = vld [vmem:[#allocation6 + $0x2b8] sm:$0xff]
    %v242 = vld [vmem:[#allocation6 + $0x2c0] sm:$0xff]
    %v243 = vld [vmem:[#allocation6 + $0x2c8] sm:$0xff]
    %v244 = vld [vmem:[#allocation6 + $0x2d0] sm:$0xff]
    %v245 = vld [vmem:[#allocation6 + $0x2d8] sm:$0xff]
    %v246 = vld [vmem:[#allocation6 + $0x2e0] sm:$0xff]
    %v247 = vld [vmem:[#allocation6 + $0x2e8] sm:$0xff]
    %v248 = vld [vmem:[#allocation6 + $0x2f0] sm:$0xff]
    %v249 = vld [vmem:[#allocation6 + $0x2f8] sm:$0xff]
    %v250 = vld [vmem:[#allocation6 + $0x300] sm:$0xff]
    %v251 = vld [vmem:[#allocation6 + $0x308] sm:$0xff]
    %v252 = vld [vmem:[#allocation6 + $0x310] sm:$0xff]
    %v253 = vld [vmem:[#allocation6 + $0x318] sm:$0xff]
    %v254 = vld [vmem:[#allocation6 + $0x320] sm:$0xff]
    %v255 = vld [vmem:[#allocation6 + $0x328] sm:$0xff]
    %v256 = vld [vmem:[#allocation6 + $0x330] sm:$0xff]
    %v257 = vld [vmem:[#allocation6 + $0x338] sm:$0xff]
    %v258 = vld [vmem:[#allocation6 + $0x340] sm:$0xff]
    %v259 = vld [vmem:[#allocation6 + $0x348] sm:$0xff]
    %v260 = vld [vmem:[#allocation6 + $0x350] sm:$0xff]
    %v261 = vld [vmem:[#allocation6 + $0x358] sm:$0xff]
    %v262 = vld [vmem:[#allocation6 + $0x360] sm:$0xff]
    %v263 = vld [vmem:[#allocation6 + $0x368] sm:$0xff]
    %v264 = vld [vmem:[#allocation6 + $0x370] sm:$0xff]
    %v265 = vld [vmem:[#allocation6 + $0x378] sm:$0xff]
    %v266 = vld [vmem:[#allocation6 + $0x380] sm:$0xff]
    %v267 = vld [vmem:[#allocation6 + $0x388] sm:$0xff]
    %v268 = vld [vmem:[#allocation6 + $0x390] sm:$0xff]
    %v269 = vld [vmem:[#allocation6 + $0x398] sm:$0xff]
    %v270 = vld [vmem:[#allocation6 + $0x3a0] sm:$0xff]
    %v271 = vld [vmem:[#allocation6 + $0x3a8] sm:$0xff]
    %v272 = vld [vmem:[#allocation6 + $0x3b0] sm:$0xff]
    %v273 = vld [vmem:[#allocation6 + $0x3b8] sm:$0xff]
    %v274 = vld [vmem:[#allocation6 + $0x3c0] sm:$0xff]
    %v275 = vld [vmem:[#allocation6 + $0x3c8] sm:$0xff]
    %v276 = vld [vmem:[#allocation6 + $0x3d0] sm:$0xff]
    %v277 = vld [vmem:[#allocation6 + $0x3d8] sm:$0xff]
    %v278 = vld [vmem:[#allocation6 + $0x3e0] sm:$0xff]
    %v279 = vld [vmem:[#allocation6 + $0x3e8] sm:$0xff]
    %v280 = vld [vmem:[#allocation6 + $0x3f0] sm:$0xff]
    %v281 = vld [vmem:[#allocation6 + $0x3f8] sm:$0xff]
    %v282 = vld [vmem:[%s10] ss:$4 sm:$0x3]
    %s283 = scalar_lea.vmem %s10, 1
    %v284 = vld [vmem:[%s283] ss:$4 sm:$0x3]
    %s285 = scalar_lea.vmem %s10, 2
    %v286 = vld [vmem:[%s285] ss:$4 sm:$0x3]
    %v287 = vld [vmem:[%s6] sm:$0xff]
    %v289 = vlaneseq
    %v290 = vshrl.u32 %v289, 7
    %v291 = vsub.s32 0, %v290
    %v292 = vrot.slane %v282, %v291
    %v293 = vlaneseq
    %v294 = vshrl.u32 %v293, 7
    %v295 = vsub.s32 1, %v294
    %v296 = vrot.slane %v282, %v295
    %v300 = vunpack.c.l.b16 %v287
    %v301 = vunpack.c.h.b16 %v287
    %v302 = vpack.c.b16 %v300, %v300
    %v303 = vpack.c.b16 %v301, %v301
    %vm304 = vcmask 64512
    %v306 = vsel %vm304, %v147, 0
    %vm308 = vcmask 1043456
    %v310 = vsel %vm308, %v302, 0
    %v313 = vsel %vm308, %v303, 0
    %315 = vmatprep.subr.bf16.mxu0 %v313
    %316 = vmatpush1.bf16.msra.mxu0 %v310
    %317 = vmatprep.subr.bf16.mxu0 0
    %318 = vmatpush1.bf16.msra.mxu0 0
    %319 = vmatprep.subr.bf16.mxu0 0
    %320 = vmatpush1.bf16.msra.mxu0 0
    %321 = vmatprep.subr.bf16.mxu0 0
    %322 = vmatpush1.bf16.msra.mxu0 0
    %323 = vmatprep.subr.bf16.mxu0 0
    %324 = vmatpush1.bf16.msra.mxu0 0
    %325 = vmatprep.subr.bf16.mxu0 0
    %326 = vmatpush1.bf16.msra.mxu0 0
    %327 = vmatprep.subr.bf16.mxu0 0
    %328 = vmatpush1.bf16.msra.mxu0 0
    %329 = vmatprep.subr.bf16.mxu0 0
    %330 = vmatpush1.bf16.msra.mxu0 0
    %331 = vmatprep.subr.bf16.mxu0 0
    %332 = vmatpush1.bf16.msra.mxu0 0
    %333 = vmatprep.subr.bf16.mxu0 0
    %334 = vmatpush1.bf16.msra.mxu0 0
    %335 = vmatprep.subr.bf16.mxu0 0
    %336 = vmatpush1.bf16.msra.mxu0 0
    %337 = vmatprep.subr.bf16.mxu0 0
    %338 = vmatpush1.bf16.msra.mxu0 0
    %339 = vmatprep.subr.bf16.mxu0 0
    %340 = vmatpush1.bf16.msra.mxu0 0
    %341 = vmatprep.subr.bf16.mxu0 0
    %342 = vmatpush1.bf16.msra.mxu0 0
    %343 = vmatprep.subr.bf16.mxu0 0
    %344 = vmatpush1.bf16.msra.mxu0 0
    %345 = vmatprep.subr.bf16.mxu0 0
    %346 = vmatpush1.bf16.msra.mxu0 0
    %347 = vmatprep.mubr.bf16.mxu0 0
    %348 = vmatmul.mubr.bf16.gmra.mrb[0].mxu0 %v306
    %v349 = vpop.f32.mrb[0].mxu0
    %v350 = vadd.f32 %v292, %v349
    %v351 = vpop.f32.mrb[0].mxu0
    %v352 = vadd.f32 %v296, %v351
    %v353 = vpop.f32.mrb[0].mxu0
    %v354 = vadd.f32 %v292, %v353
    %v355 = vpop.f32.mrb[0].mxu0
    %v356 = vadd.f32 %v296, %v355
    %357 = vdwg.mxu0
    %v358 = vmax.f32 %v350, 0.0
    %v359 = vmax.f32 %v352, 0.0
    %v360 = vmax.f32 %v354, 0.0
    %v361 = vmax.f32 %v356, 0.0
    %v362 = vpack.c.bf16 %v360, %v358
    %v363 = vpack.c.bf16 %v361, %v359
    %v366 = vunpack.c.l.b16 %v150
    %v367 = vunpack.c.l.b16 %v151
    %v368 = vpack.c.b16 %v367, %v366
    %vm369 = vcmask 130048
    %v371 = vsel %vm369, %v368, 0
    %373 = vmatprep.subr.bf16.mxu0 %v363
    %374 = vmatpush1.bf16.msra.mxu0 %v362
    %375 = vmatprep.subr.bf16.mxu0 0
    %376 = vmatpush1.bf16.msra.mxu0 0
    %377 = vmatprep.subr.bf16.mxu0 0
    %378 = vmatpush1.bf16.msra.mxu0 0
    %379 = vmatprep.subr.bf16.mxu0 0
    %380 = vmatpush1.bf16.msra.mxu0 0
    %381 = vmatprep.subr.bf16.mxu0 0
    %382 = vmatpush1.bf16.msra.mxu0 0
    %383 = vmatprep.subr.bf16.mxu0 0
    %384 = vmatpush1.bf16.msra.mxu0 0
    %385 = vmatprep.subr.bf16.mxu0 0
    %386 = vmatpush1.bf16.msra.mxu0 0
    %387 = vmatprep.subr.bf16.mxu0 0
    %388 = vmatpush1.bf16.msra.mxu0 0
    %389 = vmatprep.subr.bf16.mxu0 0
    %390 = vmatpush1.bf16.msra.mxu0 0
    %391 = vmatprep.subr.bf16.mxu0 0
    %392 = vmatpush1.bf16.msra.mxu0 0
    %393 = vmatprep.subr.bf16.mxu0 0
    %394 = vmatpush1.bf16.msra.mxu0 0
    %395 = vmatprep.subr.bf16.mxu0 0
    %396 = vmatpush1.bf16.msra.mxu0 0
    %397 = vmatprep.subr.bf16.mxu0 0
    %398 = vmatpush1.bf16.msra.mxu0 0
    %399 = vmatprep.subr.bf16.mxu0 0
    %400 = vmatpush1.bf16.msra.mxu0 0
    %401 = vmatprep.subr.bf16.mxu0 0
    %402 = vmatpush1.bf16.msra.mxu0 0
    %403 = vmatprep.subr.bf16.mxu0 0
    %404 = vmatpush1.bf16.msra.mxu0 0
    %405 = vmatprep.mubr.bf16.mxu0 0
    %406 = vmatmul.mubr.bf16.gmra.mrb[0].mxu0 %v371
    %v407 = vpop.f32.mrb[0].mxu0
    %v408 = vadd.f32 0.0, %v407
    %v409 = vpop.f32.mrb[0].mxu0
    %v410 = vadd.f32 0.0, %v409
    %v411 = vpop.f32.mrb[0].mxu0
    %v412 = vadd.f32 0.0, %v411
    %v413 = vpop.f32.mrb[0].mxu0
    %v414 = vadd.f32 0.0, %v413
    %415 = vdwg.mxu0
    %v416 = vpack.c.bf16 %v408, %v408
    %v417 = vpack.c.bf16 %v410, %v410
    %v418 = vpack.c.bf16 %v412, %v412
    %v419 = vpack.c.bf16 %v414, %v414
    %v420 = vld [vmem:[%s7] sm:$0xff]
    %v453 = vunpack.c.l.b16 %v154
    %v454 = vunpack.c.h.b16 %v154
    %v455 = vunpack.c.l.b16 %v155
    %v456 = vunpack.c.h.b16 %v155
    %v457 = vunpack.c.l.b16 %v156
    %v458 = vunpack.c.h.b16 %v156
    %v459 = vunpack.c.l.b16 %v157
    %v460 = vunpack.c.h.b16 %v157
    %v461 = vunpack.c.l.b16 %v158
    %v462 = vunpack.c.h.b16 %v158
    %v463 = vunpack.c.l.b16 %v159
    %v464 = vunpack.c.h.b16 %v159
    %v465 = vunpack.c.l.b16 %v160
    %v466 = vunpack.c.h.b16 %v160
    %v467 = vunpack.c.l.b16 %v161
    %v468 = vunpack.c.h.b16 %v161
    %v469 = vunpack.c.l.b16 %v162
    %v470 = vunpack.c.h.b16 %v162
    %v471 = vunpack.c.l.b16 %v163
    %v472 = vunpack.c.h.b16 %v163
    %v473 = vunpack.c.l.b16 %v164
    %v474 = vunpack.c.h.b16 %v164
    %v475 = vunpack.c.l.b16 %v165
    %v476 = vunpack.c.h.b16 %v165
    %v477 = vunpack.c.l.b16 %v166
    %v478 = vunpack.c.h.b16 %v166
    %v479 = vunpack.c.l.b16 %v167
    %v480 = vunpack.c.h.b16 %v167
    %v481 = vunpack.c.l.b16 %v168
    %v482 = vunpack.c.h.b16 %v168
    %v483 = vunpack.c.l.b16 %v169
    %v484 = vunpack.c.h.b16 %v169
    %v485 = vunpack.c.l.b16 %v170
    %v486 = vunpack.c.h.b16 %v170
    %v487 = vunpack.c.l.b16 %v171
    %v488 = vunpack.c.h.b16 %v171
    %v489 = vunpack.c.l.b16 %v172
    %v490 = vunpack.c.h.b16 %v172
    %v491 = vunpack.c.l.b16 %v173
    %v492 = vunpack.c.h.b16 %v173
    %v493 = vunpack.c.l.b16 %v174
    %v494 = vunpack.c.h.b16 %v174
    %v495 = vunpack.c.l.b16 %v175
    %v496 = vunpack.c.h.b16 %v175
    %v497 = vunpack.c.l.b16 %v176
    %v498 = vunpack.c.h.b16 %v176
    %v499 = vunpack.c.l.b16 %v177
    %v500 = vunpack.c.h.b16 %v177
    %v501 = vunpack.c.l.b16 %v178
    %v502 = vunpack.c.h.b16 %v178
    %v503 = vunpack.c.l.b16 %v179
    %v504 = vunpack.c.h.b16 %v179
    %v505 = vunpack.c.l.b16 %v180
    %v506 = vunpack.c.h.b16 %v180
    %v507 = vunpack.c.l.b16 %v181
    %v508 = vunpack.c.h.b16 %v181
    %v509 = vunpack.c.l.b16 %v182
    %v510 = vunpack.c.h.b16 %v182
    %v511 = vunpack.c.l.b16 %v183
    %v512 = vunpack.c.h.b16 %v183
    %v513 = vunpack.c.l.b16 %v184
    %v514 = vunpack.c.h.b16 %v184
    %v515 = vunpack.c.l.b16 %v185
    %v516 = vunpack.c.h.b16 %v185
    %v517 = vpack.c.b16 %v455, %v453
    %v518 = vpack.c.b16 %v456, %v454
    %v519 = vpack.c.b16 %v459, %v457
    %v520 = vpack.c.b16 %v460, %v458
    %v521 = vpack.c.b16 %v463, %v461
    %v522 = vpack.c.b16 %v464, %v462
    %v523 = vpack.c.b16 %v467, %v465
    %v524 = vpack.c.b16 %v468, %v466
    %v525 = vpack.c.b16 %v471, %v469
    %v526 = vpack.c.b16 %v472, %v470
    %v527 = vpack.c.b16 %v475, %v473
    %v528 = vpack.c.b16 %v476, %v474
    %v529 = vpack.c.b16 %v479, %v477
    %v530 = vpack.c.b16 %v480, %v478
    %v531 = vpack.c.b16 %v483, %v481
    %v532 = vpack.c.b16 %v484, %v482
    %v533 = vpack.c.b16 %v487, %v485
    %v534 = vpack.c.b16 %v488, %v486
    %v535 = vpack.c.b16 %v491, %v489
    %v536 = vpack.c.b16 %v492, %v490
    %v537 = vpack.c.b16 %v495, %v493
    %v538 = vpack.c.b16 %v496, %v494
    %v539 = vpack.c.b16 %v499, %v497
    %v540 = vpack.c.b16 %v500, %v498
    %v541 = vpack.c.b16 %v503, %v501
    %v542 = vpack.c.b16 %v504, %v502
    %v543 = vpack.c.b16 %v507, %v505
    %v544 = vpack.c.b16 %v508, %v506
    %v545 = vpack.c.b16 %v511, %v509
    %v546 = vpack.c.b16 %v512, %v510
    %v547 = vpack.c.b16 %v515, %v513
    %v548 = vpack.c.b16 %v516, %v514
    %581 = vmatprep.subr.bf16.mxu0 %v518
    %582 = vmatpush1.bf16.msra.mxu0 %v517
    %583 = vmatprep.subr.bf16.mxu0 %v520
    %584 = vmatpush1.bf16.msra.mxu0 %v519
    %585 = vmatprep.subr.bf16.mxu0 %v522
    %586 = vmatpush1.bf16.msra.mxu0 %v521
    %587 = vmatprep.subr.bf16.mxu0 %v524
    %588 = vmatpush1.bf16.msra.mxu0 %v523
    %589 = vmatprep.subr.bf16.mxu0 %v526
    %590 = vmatpush1.bf16.msra.mxu0 %v525
    %591 = vmatprep.subr.bf16.mxu0 %v528
    %592 = vmatpush1.bf16.msra.mxu0 %v527
    %593 = vmatprep.subr.bf16.mxu0 %v530
    %594 = vmatpush1.bf16.msra.mxu0 %v529
    %595 = vmatprep.subr.bf16.mxu0 %v532
    %596 = vmatpush1.bf16.msra.mxu0 %v531
    %597 = vmatprep.subr.bf16.mxu0 %v534
    %598 = vmatpush1.bf16.msra.mxu0 %v533
    %599 = vmatprep.subr.bf16.mxu0 %v536
    %600 = vmatpush1.bf16.msra.mxu0 %v535
    %601 = vmatprep.subr.bf16.mxu0 %v538
    %602 = vmatpush1.bf16.msra.mxu0 %v537
    %603 = vmatprep.subr.bf16.mxu0 %v540
    %604 = vmatpush1.bf16.msra.mxu0 %v539
    %605 = vmatprep.subr.bf16.mxu0 %v542
    %606 = vmatpush1.bf16.msra.mxu0 %v541
    %607 = vmatprep.subr.bf16.mxu0 %v544
    %608 = vmatpush1.bf16.msra.mxu0 %v543
    %609 = vmatprep.subr.bf16.mxu0 %v546
    %610 = vmatpush1.bf16.msra.mxu0 %v545
    %611 = vmatprep.subr.bf16.mxu0 %v548
    %612 = vmatpush1.bf16.msra.mxu0 %v547
    %613 = vmatprep.mubr.bf16.mxu0 %v417
    %614 = vmatmul.mubr.bf16.gmra.mrb[0].mxu0 %v416
    %v615 = vpop.f32.mrb[0].mxu0
    %v616 = vadd.f32 0.0, %v615
    %v617 = vpop.f32.mrb[0].mxu0
    %v618 = vadd.f32 0.0, %v617
    %v619 = vpop.f32.mrb[0].mxu0
    %v620 = vpop.f32.mrb[0].mxu0
    %621 = vdwg.mxu0
    %v623 = vunpack.c.l.b16 %v420
    %v624 = vunpack.c.h.b16 %v420
    %v625 = vpack.c.b16 %v623, %v623
    %v626 = vpack.c.b16 %v624, %v624
    %v628 = vsel %vm304, %v144, 0
    %v631 = vsel %vm308, %v625, 0
    %v634 = vsel %vm308, %v626, 0
    %636 = vmatprep.subr.bf16.mxu0 %v634
    %637 = vmatpush1.bf16.msra.mxu0 %v631
    %638 = vmatprep.subr.bf16.mxu0 0
    %639 = vmatpush1.bf16.msra.mxu0 0
    %640 = vmatprep.subr.bf16.mxu0 0
    %641 = vmatpush1.bf16.msra.mxu0 0
    %642 = vmatprep.subr.bf16.mxu0 0
    %643 = vmatpush1.bf16.msra.mxu0 0
    %644 = vmatprep.subr.bf16.mxu0 0
    %645 = vmatpush1.bf16.msra.mxu0 0
    %646 = vmatprep.subr.bf16.mxu0 0
    %647 = vmatpush1.bf16.msra.mxu0 0
    %648 = vmatprep.subr.bf16.mxu0 0
    %649 = vmatpush1.bf16.msra.mxu0 0
    %650 = vmatprep.subr.bf16.mxu0 0
    %651 = vmatpush1.bf16.msra.mxu0 0
    %652 = vmatprep.subr.bf16.mxu0 0
    %653 = vmatpush1.bf16.msra.mxu0 0
    %654 = vmatprep.subr.bf16.mxu0 0
    %655 = vmatpush1.bf16.msra.mxu0 0
    %656 = vmatprep.subr.bf16.mxu0 0
    %657 = vmatpush1.bf16.msra.mxu0 0
    %658 = vmatprep.subr.bf16.mxu0 0
    %659 = vmatpush1.bf16.msra.mxu0 0
    %660 = vmatprep.subr.bf16.mxu0 0
    %661 = vmatpush1.bf16.msra.mxu0 0
    %662 = vmatprep.subr.bf16.mxu0 0
    %663 = vmatpush1.bf16.msra.mxu0 0
    %664 = vmatprep.subr.bf16.mxu0 0
    %665 = vmatpush1.bf16.msra.mxu0 0
    %666 = vmatprep.subr.bf16.mxu0 0
    %667 = vmatpush1.bf16.msra.mxu0 0
    %668 = vmatprep.mubr.bf16.mxu0 0
    %669 = vmatmul.mubr.bf16.gmra.mrb[0].mxu0 %v628
    %v670 = vpop.f32.mrb[0].mxu0
    %v671 = vadd.f32 %v616, %v670
    %v672 = vpop.f32.mrb[0].mxu0
    %v673 = vadd.f32 %v618, %v672
    %v674 = vpop.f32.mrb[0].mxu0
    %v675 = vpop.f32.mrb[0].mxu0
    %676 = vdwg.mxu0
    %v709 = vunpack.c.l.b16 %v186
    %v710 = vunpack.c.h.b16 %v186
    %v711 = vunpack.c.l.b16 %v187
    %v712 = vunpack.c.h.b16 %v187
    %v713 = vunpack.c.l.b16 %v188
    %v714 = vunpack.c.h.b16 %v188
    %v715 = vunpack.c.l.b16 %v189
    %v716 = vunpack.c.h.b16 %v189
    %v717 = vunpack.c.l.b16 %v190
    %v718 = vunpack.c.h.b16 %v190
    %v719 = vunpack.c.l.b16 %v191
    %v720 = vunpack.c.h.b16 %v191
    %v721 = vunpack.c.l.b16 %v192
    %v722 = vunpack.c.h.b16 %v192
    %v723 = vunpack.c.l.b16 %v193
    %v724 = vunpack.c.h.b16 %v193
    %v725 = vunpack.c.l.b16 %v194
    %v726 = vunpack.c.h.b16 %v194
    %v727 = vunpack.c.l.b16 %v195
    %v728 = vunpack.c.h.b16 %v195
    %v729 = vunpack.c.l.b16 %v196
    %v730 = vunpack.c.h.b16 %v196
    %v731 = vunpack.c.l.b16 %v197
    %v732 = vunpack.c.h.b16 %v197
    %v733 = vunpack.c.l.b16 %v198
    %v734 = vunpack.c.h.b16 %v198
    %v735 = vunpack.c.l.b16 %v199
    %v736 = vunpack.c.h.b16 %v199
    %v737 = vunpack.c.l.b16 %v200
    %v738 = vunpack.c.h.b16 %v200
    %v739 = vunpack.c.l.b16 %v201
    %v740 = vunpack.c.h.b16 %v201
    %v741 = vunpack.c.l.b16 %v202
    %v742 = vunpack.c.h.b16 %v202
    %v743 = vunpack.c.l.b16 %v203
    %v744 = vunpack.c.h.b16 %v203
    %v745 = vunpack.c.l.b16 %v204
    %v746 = vunpack.c.h.b16 %v204
    %v747 = vunpack.c.l.b16 %v205
    %v748 = vunpack.c.h.b16 %v205
    %v749 = vunpack.c.l.b16 %v206
    %v750 = vunpack.c.h.b16 %v206
    %v751 = vunpack.c.l.b16 %v207
    %v752 = vunpack.c.h.b16 %v207
    %v753 = vunpack.c.l.b16 %v208
    %v754 = vunpack.c.h.b16 %v208
    %v755 = vunpack.c.l.b16 %v209
    %v756 = vunpack.c.h.b16 %v209
    %v757 = vunpack.c.l.b16 %v210
    %v758 = vunpack.c.h.b16 %v210
    %v759 = vunpack.c.l.b16 %v211
    %v760 = vunpack.c.h.b16 %v211
    %v761 = vunpack.c.l.b16 %v212
    %v762 = vunpack.c.h.b16 %v212
    %v763 = vunpack.c.l.b16 %v213
    %v764 = vunpack.c.h.b16 %v213
    %v765 = vunpack.c.l.b16 %v214
    %v766 = vunpack.c.h.b16 %v214
    %v767 = vunpack.c.l.b16 %v215
    %v768 = vunpack.c.h.b16 %v215
    %v769 = vunpack.c.l.b16 %v216
    %v770 = vunpack.c.h.b16 %v216
    %v771 = vunpack.c.l.b16 %v217
    %v772 = vunpack.c.h.b16 %v217
    %v773 = vpack.c.b16 %v711, %v709
    %v774 = vpack.c.b16 %v712, %v710
    %v775 = vpack.c.b16 %v715, %v713
    %v776 = vpack.c.b16 %v716, %v714
    %v777 = vpack.c.b16 %v719, %v717
    %v778 = vpack.c.b16 %v720, %v718
    %v779 = vpack.c.b16 %v723, %v721
    %v780 = vpack.c.b16 %v724, %v722
    %v781 = vpack.c.b16 %v727, %v725
    %v782 = vpack.c.b16 %v728, %v726
    %v783 = vpack.c.b16 %v731, %v729
    %v784 = vpack.c.b16 %v732, %v730
    %v785 = vpack.c.b16 %v735, %v733
    %v786 = vpack.c.b16 %v736, %v734
    %v787 = vpack.c.b16 %v739, %v737
    %v788 = vpack.c.b16 %v740, %v738
    %v789 = vpack.c.b16 %v743, %v741
    %v790 = vpack.c.b16 %v744, %v742
    %v791 = vpack.c.b16 %v747, %v745
    %v792 = vpack.c.b16 %v748, %v746
    %v793 = vpack.c.b16 %v751, %v749
    %v794 = vpack.c.b16 %v752, %v750
    %v795 = vpack.c.b16 %v755, %v753
    %v796 = vpack.c.b16 %v756, %v754
    %v797 = vpack.c.b16 %v759, %v757
    %v798 = vpack.c.b16 %v760, %v758
    %v799 = vpack.c.b16 %v763, %v761
    %v800 = vpack.c.b16 %v764, %v762
    %v801 = vpack.c.b16 %v767, %v765
    %v802 = vpack.c.b16 %v768, %v766
    %v803 = vpack.c.b16 %v771, %v769
    %v804 = vpack.c.b16 %v772, %v770
    %837 = vmatprep.subr.bf16.mxu0 %v774
    %838 = vmatpush1.bf16.msra.mxu0 %v773
    %839 = vmatprep.subr.bf16.mxu0 %v776
    %840 = vmatpush1.bf16.msra.mxu0 %v775
    %841 = vmatprep.subr.bf16.mxu0 %v778
    %842 = vmatpush1.bf16.msra.mxu0 %v777
    %843 = vmatprep.subr.bf16.mxu0 %v780
    %844 = vmatpush1.bf16.msra.mxu0 %v779
    %845 = vmatprep.subr.bf16.mxu0 %v782
    %846 = vmatpush1.bf16.msra.mxu0 %v781
    %847 = vmatprep.subr.bf16.mxu0 %v784
    %848 = vmatpush1.bf16.msra.mxu0 %v783
    %849 = vmatprep.subr.bf16.mxu0 %v786
    %850 = vmatpush1.bf16.msra.mxu0 %v785
    %851 = vmatprep.subr.bf16.mxu0 %v788
    %852 = vmatpush1.bf16.msra.mxu0 %v787
    %853 = vmatprep.subr.bf16.mxu0 %v790
    %854 = vmatpush1.bf16.msra.mxu0 %v789
    %855 = vmatprep.subr.bf16.mxu0 %v792
    %856 = vmatpush1.bf16.msra.mxu0 %v791
    %857 = vmatprep.subr.bf16.mxu0 %v794
    %858 = vmatpush1.bf16.msra.mxu0 %v793
    %859 = vmatprep.subr.bf16.mxu0 %v796
    %860 = vmatpush1.bf16.msra.mxu0 %v795
    %861 = vmatprep.subr.bf16.mxu0 %v798
    %862 = vmatpush1.bf16.msra.mxu0 %v797
    %863 = vmatprep.subr.bf16.mxu0 %v800
    %864 = vmatpush1.bf16.msra.mxu0 %v799
    %865 = vmatprep.subr.bf16.mxu0 %v802
    %866 = vmatpush1.bf16.msra.mxu0 %v801
    %867 = vmatprep.subr.bf16.mxu0 %v804
    %868 = vmatpush1.bf16.msra.mxu0 %v803
    %869 = vmatprep.mubr.bf16.mxu0 %v419
    %870 = vmatmul.mubr.bf16.gmra.mrb[0].mxu0 %v418
    %v871 = vpop.f32.mrb[0].mxu0
    %v872 = vadd.f32 0.0, %v871
    %v873 = vpop.f32.mrb[0].mxu0
    %v874 = vadd.f32 0.0, %v873
    %v875 = vpop.f32.mrb[0].mxu0
    %v876 = vpop.f32.mrb[0].mxu0
    %877 = vdwg.mxu0
    %v878 = vadd.f32 %v671, %v872
    %v879 = vadd.f32 %v673, %v874
    %v881 = vlaneseq
    %v882 = vshrl.u32 %v881, 7
    %v883 = vsub.s32 0, %v882
    %v884 = vrot.slane %v284, %v883
    %v885 = vlaneseq
    %v886 = vshrl.u32 %v885, 7
    %v887 = vsub.s32 1, %v886
    %v888 = vrot.slane %v284, %v887
    %v891 = vadd.f32 %v878, %v884
    %v892 = vadd.f32 %v879, %v888
    %v893 = vmax.f32 %v891, 0.0
    %v894 = vmax.f32 %v892, 0.0
    %v895 = vpack.c.bf16 %v893, %v893
    %v896 = vpack.c.bf16 %v894, %v894
    %v898 = vsel %vm304, %v152, 0
    %v901 = vsel %vm308, %v895, 0
    %v904 = vsel %vm308, %v896, 0
    %906 = vmatprep.subr.bf16.mxu0 %v904
    %907 = vmatpush1.bf16.msra.mxu0 %v901
    %908 = vmatprep.subr.bf16.mxu0 0
    %909 = vmatpush1.bf16.msra.mxu0 0
    %910 = vmatprep.subr.bf16.mxu0 0
    %911 = vmatpush1.bf16.msra.mxu0 0
    %912 = vmatprep.subr.bf16.mxu0 0
    %913 = vmatpush1.bf16.msra.mxu0 0
    %914 = vmatprep.subr.bf16.mxu0 0
    %915 = vmatpush1.bf16.msra.mxu0 0
    %916 = vmatprep.subr.bf16.mxu0 0
    %917 = vmatpush1.bf16.msra.mxu0 0
    %918 = vmatprep.subr.bf16.mxu0 0
    %919 = vmatpush1.bf16.msra.mxu0 0
    %920 = vmatprep.subr.bf16.mxu0 0
    %921 = vmatpush1.bf16.msra.mxu0 0
    %922 = vmatprep.subr.bf16.mxu0 0
    %923 = vmatpush1.bf16.msra.mxu0 0
    %924 = vmatprep.subr.bf16.mxu0 0
    %925 = vmatpush1.bf16.msra.mxu0 0
    %926 = vmatprep.subr.bf16.mxu0 0
    %927 = vmatpush1.bf16.msra.mxu0 0
    %928 = vmatprep.subr.bf16.mxu0 0
    %929 = vmatpush1.bf16.msra.mxu0 0
    %930 = vmatprep.subr.bf16.mxu0 0
    %931 = vmatpush1.bf16.msra.mxu0 0
    %932 = vmatprep.subr.bf16.mxu0 0
    %933 = vmatpush1.bf16.msra.mxu0 0
    %934 = vmatprep.subr.bf16.mxu0 0
    %935 = vmatpush1.bf16.msra.mxu0 0
    %936 = vmatprep.subr.bf16.mxu0 0
    %937 = vmatpush1.bf16.msra.mxu0 0
    %938 = vmatprep.mubr.bf16.mxu0 0
    %939 = vmatmul.mubr.bf16.gmra.mrb[0].mxu0 %v898
    %v940 = vpop.f32.mrb[0].mxu0
    %v941 = vadd.f32 0.0, %v940
    %v942 = vpop.f32.mrb[0].mxu0
    %v943 = vadd.f32 0.0, %v942
    %v944 = vpop.f32.mrb[0].mxu0
    %v945 = vpop.f32.mrb[0].mxu0
    %946 = vdwg.mxu0
    %v947 = vpack.c.bf16 %v941, %v941
    %v948 = vpack.c.bf16 %v943, %v943
    %v950 = vsel %vm369, %v153, 0
    %952 = vmatprep.subr.bf16.mxu0 %v363
    %953 = vmatpush1.bf16.msra.mxu0 %v362
    %954 = vmatprep.subr.bf16.mxu0 0
    %955 = vmatpush1.bf16.msra.mxu0 0
    %956 = vmatprep.subr.bf16.mxu0 0
    %957 = vmatpush1.bf16.msra.mxu0 0
    %958 = vmatprep.subr.bf16.mxu0 0
    %959 = vmatpush1.bf16.msra.mxu0 0
    %960 = vmatprep.subr.bf16.mxu0 0
    %961 = vmatpush1.bf16.msra.mxu0 0
    %962 = vmatprep.subr.bf16.mxu0 0
    %963 = vmatpush1.bf16.msra.mxu0 0
    %964 = vmatprep.subr.bf16.mxu0 0
    %965 = vmatpush1.bf16.msra.mxu0 0
    %966 = vmatprep.subr.bf16.mxu0 0
    %967 = vmatpush1.bf16.msra.mxu0 0
    %968 = vmatprep.subr.bf16.mxu0 0
    %969 = vmatpush1.bf16.msra.mxu0 0
    %970 = vmatprep.subr.bf16.mxu0 0
    %971 = vmatpush1.bf16.msra.mxu0 0
    %972 = vmatprep.subr.bf16.mxu0 0
    %973 = vmatpush1.bf16.msra.mxu0 0
    %974 = vmatprep.subr.bf16.mxu0 0
    %975 = vmatpush1.bf16.msra.mxu0 0
    %976 = vmatprep.subr.bf16.mxu0 0
    %977 = vmatpush1.bf16.msra.mxu0 0
    %978 = vmatprep.subr.bf16.mxu0 0
    %979 = vmatpush1.bf16.msra.mxu0 0
    %980 = vmatprep.subr.bf16.mxu0 0
    %981 = vmatpush1.bf16.msra.mxu0 0
    %982 = vmatprep.subr.bf16.mxu0 0
    %983 = vmatpush1.bf16.msra.mxu0 0
    %984 = vmatprep.mubr.bf16.mxu0 0
    %985 = vmatmul.mubr.bf16.gmra.mrb[0].mxu0 %v950
    %v986 = vpop.f32.mrb[0].mxu0
    %v987 = vadd.f32 0.0, %v986
    %v988 = vpop.f32.mrb[0].mxu0
    %v989 = vadd.f32 0.0, %v988
    %v990 = vpop.f32.mrb[0].mxu0
    %v991 = vpop.f32.mrb[0].mxu0
    %992 = vdwg.mxu0
    %v993 = vpack.c.bf16 %v987, %v987
    %v994 = vpack.c.bf16 %v989, %v989
    %v995 = vld [vmem:[%s8] sm:$0xff]
    %v1028 = vunpack.c.l.b16 %v218
    %v1029 = vunpack.c.h.b16 %v218
    %v1030 = vunpack.c.l.b16 %v219
    %v1031 = vunpack.c.h.b16 %v219
    %v1032 = vunpack.c.l.b16 %v220
    %v1033 = vunpack.c.h.b16 %v220
    %v1034 = vunpack.c.l.b16 %v221
    %v1035 = vunpack.c.h.b16 %v221
    %v1036 = vunpack.c.l.b16 %v222
    %v1037 = vunpack.c.h.b16 %v222
    %v1038 = vunpack.c.l.b16 %v223
    %v1039 = vunpack.c.h.b16 %v223
    %v1040 = vunpack.c.l.b16 %v224
    %v1041 = vunpack.c.h.b16 %v224
    %v1042 = vunpack.c.l.b16 %v225
    %v1043 = vunpack.c.h.b16 %v225
    %v1044 = vunpack.c.l.b16 %v226
    %v1045 = vunpack.c.h.b16 %v226
    %v1046 = vunpack.c.l.b16 %v227
    %v1047 = vunpack.c.h.b16 %v227
    %v1048 = vunpack.c.l.b16 %v228
    %v1049 = vunpack.c.h.b16 %v228
    %v1050 = vunpack.c.l.b16 %v229
    %v1051 = vunpack.c.h.b16 %v229
    %v1052 = vunpack.c.l.b16 %v230
    %v1053 = vunpack.c.h.b16 %v230
    %v1054 = vunpack.c.l.b16 %v231
    %v1055 = vunpack.c.h.b16 %v231
    %v1056 = vunpack.c.l.b16 %v232
    %v1057 = vunpack.c.h.b16 %v232
    %v1058 = vunpack.c.l.b16 %v233
    %v1059 = vunpack.c.h.b16 %v233
    %v1060 = vunpack.c.l.b16 %v234
    %v1061 = vunpack.c.h.b16 %v234
    %v1062 = vunpack.c.l.b16 %v235
    %v1063 = vunpack.c.h.b16 %v235
    %v1064 = vunpack.c.l.b16 %v236
    %v1065 = vunpack.c.h.b16 %v236
    %v1066 = vunpack.c.l.b16 %v237
    %v1067 = vunpack.c.h.b16 %v237
    %v1068 = vunpack.c.l.b16 %v238
    %v1069 = vunpack.c.h.b16 %v238
    %v1070 = vunpack.c.l.b16 %v239
    %v1071 = vunpack.c.h.b16 %v239
    %v1072 = vunpack.c.l.b16 %v240
    %v1073 = vunpack.c.h.b16 %v240
    %v1074 = vunpack.c.l.b16 %v241
    %v1075 = vunpack.c.h.b16 %v241
    %v1076 = vunpack.c.l.b16 %v242
    %v1077 = vunpack.c.h.b16 %v242
    %v1078 = vunpack.c.l.b16 %v243
    %v1079 = vunpack.c.h.b16 %v243
    %v1080 = vunpack.c.l.b16 %v244
    %v1081 = vunpack.c.h.b16 %v244
    %v1082 = vunpack.c.l.b16 %v245
    %v1083 = vunpack.c.h.b16 %v245
    %v1084 = vunpack.c.l.b16 %v246
    %v1085 = vunpack.c.h.b16 %v246
    %v1086 = vunpack.c.l.b16 %v247
    %v1087 = vunpack.c.h.b16 %v247
    %v1088 = vunpack.c.l.b16 %v248
    %v1089 = vunpack.c.h.b16 %v248
    %v1090 = vunpack.c.l.b16 %v249
    %v1091 = vunpack.c.h.b16 %v249
    %v1092 = vpack.c.b16 %v1030, %v1028
    %v1093 = vpack.c.b16 %v1031, %v1029
    %v1094 = vpack.c.b16 %v1034, %v1032
    %v1095 = vpack.c.b16 %v1035, %v1033
    %v1096 = vpack.c.b16 %v1038, %v1036
    %v1097 = vpack.c.b16 %v1039, %v1037
    %v1098 = vpack.c.b16 %v1042, %v1040
    %v1099 = vpack.c.b16 %v1043, %v1041
    %v1100 = vpack.c.b16 %v1046, %v1044
    %v1101 = vpack.c.b16 %v1047, %v1045
    %v1102 = vpack.c.b16 %v1050, %v1048
    %v1103 = vpack.c.b16 %v1051, %v1049
    %v1104 = vpack.c.b16 %v1054, %v1052
    %v1105 = vpack.c.b16 %v1055, %v1053
    %v1106 = vpack.c.b16 %v1058, %v1056
    %v1107 = vpack.c.b16 %v1059, %v1057
    %v1108 = vpack.c.b16 %v1062, %v1060
    %v1109 = vpack.c.b16 %v1063, %v1061
    %v1110 = vpack.c.b16 %v1066, %v1064
    %v1111 = vpack.c.b16 %v1067, %v1065
    %v1112 = vpack.c.b16 %v1070, %v1068
    %v1113 = vpack.c.b16 %v1071, %v1069
    %v1114 = vpack.c.b16 %v1074, %v1072
    %v1115 = vpack.c.b16 %v1075, %v1073
    %v1116 = vpack.c.b16 %v1078, %v1076
    %v1117 = vpack.c.b16 %v1079, %v1077
    %v1118 = vpack.c.b16 %v1082, %v1080
    %v1119 = vpack.c.b16 %v1083, %v1081
    %v1120 = vpack.c.b16 %v1086, %v1084
    %v1121 = vpack.c.b16 %v1087, %v1085
    %v1122 = vpack.c.b16 %v1090, %v1088
    %v1123 = vpack.c.b16 %v1091, %v1089
    %1156 = vmatprep.subr.bf16.mxu0 %v1093
    %1157 = vmatpush1.bf16.msra.mxu0 %v1092
    %1158 = vmatprep.subr.bf16.mxu0 %v1095
    %1159 = vmatpush1.bf16.msra.mxu0 %v1094
    %1160 = vmatprep.subr.bf16.mxu0 %v1097
    %1161 = vmatpush1.bf16.msra.mxu0 %v1096
    %1162 = vmatprep.subr.bf16.mxu0 %v1099
    %1163 = vmatpush1.bf16.msra.mxu0 %v1098
    %1164 = vmatprep.subr.bf16.mxu0 %v1101
    %1165 = vmatpush1.bf16.msra.mxu0 %v1100
    %1166 = vmatprep.subr.bf16.mxu0 %v1103
    %1167 = vmatpush1.bf16.msra.mxu0 %v1102
    %1168 = vmatprep.subr.bf16.mxu0 %v1105
    %1169 = vmatpush1.bf16.msra.mxu0 %v1104
    %1170 = vmatprep.subr.bf16.mxu0 %v1107
    %1171 = vmatpush1.bf16.msra.mxu0 %v1106
    %1172 = vmatprep.subr.bf16.mxu0 %v1109
    %1173 = vmatpush1.bf16.msra.mxu0 %v1108
    %1174 = vmatprep.subr.bf16.mxu0 %v1111
    %1175 = vmatpush1.bf16.msra.mxu0 %v1110
    %1176 = vmatprep.subr.bf16.mxu0 %v1113
    %1177 = vmatpush1.bf16.msra.mxu0 %v1112
    %1178 = vmatprep.subr.bf16.mxu0 %v1115
    %1179 = vmatpush1.bf16.msra.mxu0 %v1114
    %1180 = vmatprep.subr.bf16.mxu0 %v1117
    %1181 = vmatpush1.bf16.msra.mxu0 %v1116
    %1182 = vmatprep.subr.bf16.mxu0 %v1119
    %1183 = vmatpush1.bf16.msra.mxu0 %v1118
    %1184 = vmatprep.subr.bf16.mxu0 %v1121
    %1185 = vmatpush1.bf16.msra.mxu0 %v1120
    %1186 = vmatprep.subr.bf16.mxu0 %v1123
    %1187 = vmatpush1.bf16.msra.mxu0 %v1122
    %1188 = vmatprep.mubr.bf16.mxu0 %v948
    %1189 = vmatmul.mubr.bf16.gmra.mrb[0].mxu0 %v947
    %v1190 = vpop.f32.mrb[0].mxu0
    %v1191 = vadd.f32 0.0, %v1190
    %v1192 = vpop.f32.mrb[0].mxu0
    %v1193 = vadd.f32 0.0, %v1192
    %v1194 = vpop.f32.mrb[0].mxu0
    %v1195 = vpop.f32.mrb[0].mxu0
    %1196 = vdwg.mxu0
    %v1198 = vunpack.c.l.b16 %v995
    %v1199 = vunpack.c.h.b16 %v995
    %v1200 = vpack.c.b16 %v1198, %v1198
    %v1201 = vpack.c.b16 %v1199, %v1199
    %v1203 = vsel %vm304, %v149, 0
    %v1206 = vsel %vm308, %v1200, 0
    %v1209 = vsel %vm308, %v1201, 0
    %1211 = vmatprep.subr.bf16.mxu0 %v1209
    %1212 = vmatpush1.bf16.msra.mxu0 %v1206
    %1213 = vmatprep.subr.bf16.mxu0 0
    %1214 = vmatpush1.bf16.msra.mxu0 0
    %1215 = vmatprep.subr.bf16.mxu0 0
    %1216 = vmatpush1.bf16.msra.mxu0 0
    %1217 = vmatprep.subr.bf16.mxu0 0
    %1218 = vmatpush1.bf16.msra.mxu0 0
    %1219 = vmatprep.subr.bf16.mxu0 0
    %1220 = vmatpush1.bf16.msra.mxu0 0
    %1221 = vmatprep.subr.bf16.mxu0 0
    %1222 = vmatpush1.bf16.msra.mxu0 0
    %1223 = vmatprep.subr.bf16.mxu0 0
    %1224 = vmatpush1.bf16.msra.mxu0 0
    %1225 = vmatprep.subr.bf16.mxu0 0
    %1226 = vmatpush1.bf16.msra.mxu0 0
    %1227 = vmatprep.subr.bf16.mxu0 0
    %1228 = vmatpush1.bf16.msra.mxu0 0
    %1229 = vmatprep.subr.bf16.mxu0 0
    %1230 = vmatpush1.bf16.msra.mxu0 0
    %1231 = vmatprep.subr.bf16.mxu0 0
    %1232 = vmatpush1.bf16.msra.mxu0 0
    %1233 = vmatprep.subr.bf16.mxu0 0
    %1234 = vmatpush1.bf16.msra.mxu0 0
    %1235 = vmatprep.subr.bf16.mxu0 0
    %1236 = vmatpush1.bf16.msra.mxu0 0
    %1237 = vmatprep.subr.bf16.mxu0 0
    %1238 = vmatpush1.bf16.msra.mxu0 0
    %1239 = vmatprep.subr.bf16.mxu0 0
    %1240 = vmatpush1.bf16.msra.mxu0 0
    %1241 = vmatprep.subr.bf16.mxu0 0
    %1242 = vmatpush1.bf16.msra.mxu0 0
    %1243 = vmatprep.mubr.bf16.mxu0 0
    %1244 = vmatmul.mubr.bf16.gmra.mrb[0].mxu0 %v1203
    %v1245 = vpop.f32.mrb[0].mxu0
    %v1246 = vadd.f32 %v1191, %v1245
    %v1247 = vpop.f32.mrb[0].mxu0
    %v1248 = vadd.f32 %v1193, %v1247
    %v1249 = vpop.f32.mrb[0].mxu0
    %v1250 = vpop.f32.mrb[0].mxu0
    %1251 = vdwg.mxu0
    %v1284 = vunpack.c.l.b16 %v250
    %v1285 = vunpack.c.h.b16 %v250
    %v1286 = vunpack.c.l.b16 %v251
    %v1287 = vunpack.c.h.b16 %v251
    %v1288 = vunpack.c.l.b16 %v252
    %v1289 = vunpack.c.h.b16 %v252
    %v1290 = vunpack.c.l.b16 %v253
    %v1291 = vunpack.c.h.b16 %v253
    %v1292 = vunpack.c.l.b16 %v254
    %v1293 = vunpack.c.h.b16 %v254
    %v1294 = vunpack.c.l.b16 %v255
    %v1295 = vunpack.c.h.b16 %v255
    %v1296 = vunpack.c.l.b16 %v256
    %v1297 = vunpack.c.h.b16 %v256
    %v1298 = vunpack.c.l.b16 %v257
    %v1299 = vunpack.c.h.b16 %v257
    %v1300 = vunpack.c.l.b16 %v258
    %v1301 = vunpack.c.h.b16 %v258
    %v1302 = vunpack.c.l.b16 %v259
    %v1303 = vunpack.c.h.b16 %v259
    %v1304 = vunpack.c.l.b16 %v260
    %v1305 = vunpack.c.h.b16 %v260
    %v1306 = vunpack.c.l.b16 %v261
    %v1307 = vunpack.c.h.b16 %v261
    %v1308 = vunpack.c.l.b16 %v262
    %v1309 = vunpack.c.h.b16 %v262
    %v1310 = vunpack.c.l.b16 %v263
    %v1311 = vunpack.c.h.b16 %v263
    %v1312 = vunpack.c.l.b16 %v264
    %v1313 = vunpack.c.h.b16 %v264
    %v1314 = vunpack.c.l.b16 %v265
    %v1315 = vunpack.c.h.b16 %v265
    %v1316 = vunpack.c.l.b16 %v266
    %v1317 = vunpack.c.h.b16 %v266
    %v1318 = vunpack.c.l.b16 %v267
    %v1319 = vunpack.c.h.b16 %v267
    %v1320 = vunpack.c.l.b16 %v268
    %v1321 = vunpack.c.h.b16 %v268
    %v1322 = vunpack.c.l.b16 %v269
    %v1323 = vunpack.c.h.b16 %v269
    %v1324 = vunpack.c.l.b16 %v270
    %v1325 = vunpack.c.h.b16 %v270
    %v1326 = vunpack.c.l.b16 %v271
    %v1327 = vunpack.c.h.b16 %v271
    %v1328 = vunpack.c.l.b16 %v272
    %v1329 = vunpack.c.h.b16 %v272
    %v1330 = vunpack.c.l.b16 %v273
    %v1331 = vunpack.c.h.b16 %v273
    %v1332 = vunpack.c.l.b16 %v274
    %v1333 = vunpack.c.h.b16 %v274
    %v1334 = vunpack.c.l.b16 %v275
    %v1335 = vunpack.c.h.b16 %v275
    %v1336 = vunpack.c.l.b16 %v276
    %v1337 = vunpack.c.h.b16 %v276
    %v1338 = vunpack.c.l.b16 %v277
    %v1339 = vunpack.c.h.b16 %v277
    %v1340 = vunpack.c.l.b16 %v278
    %v1341 = vunpack.c.h.b16 %v278
    %v1342 = vunpack.c.l.b16 %v279
    %v1343 = vunpack.c.h.b16 %v279
    %v1344 = vunpack.c.l.b16 %v280
    %v1345 = vunpack.c.h.b16 %v280
    %v1346 = vunpack.c.l.b16 %v281
    %v1347 = vunpack.c.h.b16 %v281
    %v1348 = vpack.c.b16 %v1286, %v1284
    %v1349 = vpack.c.b16 %v1287, %v1285
    %v1350 = vpack.c.b16 %v1290, %v1288
    %v1351 = vpack.c.b16 %v1291, %v1289
    %v1352 = vpack.c.b16 %v1294, %v1292
    %v1353 = vpack.c.b16 %v1295, %v1293
    %v1354 = vpack.c.b16 %v1298, %v1296
    %v1355 = vpack.c.b16 %v1299, %v1297
    %v1356 = vpack.c.b16 %v1302, %v1300
    %v1357 = vpack.c.b16 %v1303, %v1301
    %v1358 = vpack.c.b16 %v1306, %v1304
    %v1359 = vpack.c.b16 %v1307, %v1305
    %v1360 = vpack.c.b16 %v1310, %v1308
    %v1361 = vpack.c.b16 %v1311, %v1309
    %v1362 = vpack.c.b16 %v1314, %v1312
    %v1363 = vpack.c.b16 %v1315, %v1313
    %v1364 = vpack.c.b16 %v1318, %v1316
    %v1365 = vpack.c.b16 %v1319, %v1317
    %v1366 = vpack.c.b16 %v1322, %v1320
    %v1367 = vpack.c.b16 %v1323, %v1321
    %v1368 = vpack.c.b16 %v1326, %v1324
    %v1369 = vpack.c.b16 %v1327, %v1325
    %v1370 = vpack.c.b16 %v1330, %v1328
    %v1371 = vpack.c.b16 %v1331, %v1329
    %v1372 = vpack.c.b16 %v1334, %v1332
    %v1373 = vpack.c.b16 %v1335, %v1333
    %v1374 = vpack.c.b16 %v1338, %v1336
    %v1375 = vpack.c.b16 %v1339, %v1337
    %v1376 = vpack.c.b16 %v1342, %v1340
    %v1377 = vpack.c.b16 %v1343, %v1341
    %v1378 = vpack.c.b16 %v1346, %v1344
    %v1379 = vpack.c.b16 %v1347, %v1345
    %1412 = vmatprep.subr.bf16.mxu0 %v1349
    %1413 = vmatpush1.bf16.msra.mxu0 %v1348
    %1414 = vmatprep.subr.bf16.mxu0 %v1351
    %1415 = vmatpush1.bf16.msra.mxu0 %v1350
    %1416 = vmatprep.subr.bf16.mxu0 %v1353
    %1417 = vmatpush1.bf16.msra.mxu0 %v1352
    %1418 = vmatprep.subr.bf16.mxu0 %v1355
    %1419 = vmatpush1.bf16.msra.mxu0 %v1354
    %1420 = vmatprep.subr.bf16.mxu0 %v1357
    %1421 = vmatpush1.bf16.msra.mxu0 %v1356
    %1422 = vmatprep.subr.bf16.mxu0 %v1359
    %1423 = vmatpush1.bf16.msra.mxu0 %v1358
    %1424 = vmatprep.subr.bf16.mxu0 %v1361
    %1425 = vmatpush1.bf16.msra.mxu0 %v1360
    %1426 = vmatprep.subr.bf16.mxu0 %v1363
    %1427 = vmatpush1.bf16.msra.mxu0 %v1362
    %1428 = vmatprep.subr.bf16.mxu0 %v1365
    %1429 = vmatpush1.bf16.msra.mxu0 %v1364
    %1430 = vmatprep.subr.bf16.mxu0 %v1367
    %1431 = vmatpush1.bf16.msra.mxu0 %v1366
    %1432 = vmatprep.subr.bf16.mxu0 %v1369
    %1433 = vmatpush1.bf16.msra.mxu0 %v1368
    %1434 = vmatprep.subr.bf16.mxu0 %v1371
    %1435 = vmatpush1.bf16.msra.mxu0 %v1370
    %1436 = vmatprep.subr.bf16.mxu0 %v1373
    %1437 = vmatpush1.bf16.msra.mxu0 %v1372
    %1438 = vmatprep.subr.bf16.mxu0 %v1375
    %1439 = vmatpush1.bf16.msra.mxu0 %v1374
    %1440 = vmatprep.subr.bf16.mxu0 %v1377
    %1441 = vmatpush1.bf16.msra.mxu0 %v1376
    %1442 = vmatprep.subr.bf16.mxu0 %v1379
    %1443 = vmatpush1.bf16.msra.mxu0 %v1378
    %1444 = vmatprep.mubr.bf16.mxu0 %v994
    %1445 = vmatmul.mubr.bf16.gmra.mrb[0].mxu0 %v993
    %v1446 = vpop.f32.mrb[0].mxu0
    %v1447 = vadd.f32 0.0, %v1446
    %v1448 = vpop.f32.mrb[0].mxu0
    %v1449 = vadd.f32 0.0, %v1448
    %v1450 = vpop.f32.mrb[0].mxu0
    %v1451 = vpop.f32.mrb[0].mxu0
    %1452 = vdwg.mxu0
    %v1453 = vadd.f32 %v1246, %v1447
    %v1454 = vadd.f32 %v1248, %v1449
    %v1456 = vlaneseq
    %v1457 = vshrl.u32 %v1456, 7
    %v1458 = vsub.s32 0, %v1457
    %v1459 = vrot.slane %v286, %v1458
    %v1460 = vlaneseq
    %v1461 = vshrl.u32 %v1460, 7
    %v1462 = vsub.s32 1, %v1461
    %v1463 = vrot.slane %v286, %v1462
    %v1466 = vadd.f32 %v1453, %v1459
    %v1467 = vadd.f32 %v1454, %v1463
    %v1468 = vmax.f32 %v1466, 0.0
    %v1469 = vmax.f32 %v1467, 0.0
    %v1470 = vpack.c.bf16 %v1468, %v1468
    %v1471 = vpack.c.bf16 %v1469, %v1469
    %s1472 = smul.u32 4, 96
    %s1473 = smul.u32 %s1472, 1
    %s1474 = sshll.u32 %s1473, 4
    %1475 = dma.done [#allocation5], %s1474
    %s1476 = smul.u32 4, 64
    %s1477 = smul.u32 %s1476, 1
    %s1478 = sshll.u32 %s1477, 4
    %1479 = dma.done %s74, %s1478
    %s1480 = smul.u32 4, 16
    %s1481 = smul.u32 %s1480, 1
    %s1482 = sshll.u32 %s1481, 4
    %1483 = dma.done %s86, %s1482
    %v1484 = vld [vmem:[#allocation2] sm:$0xff]
    %v1485 = vld [vmem:[#allocation2 + $0x8] sm:$0xff]
    %v1486 = vld [vmem:[#allocation2 + $0x10] sm:$0xff]
    %v1487 = vld [vmem:[#allocation2 + $0x18] sm:$0xff]
    %v1488 = vld [vmem:[#allocation2 + $0x20] sm:$0xff]
    %v1489 = vld [vmem:[#allocation2 + $0x28] sm:$0xff]
    %v1490 = vld [vmem:[#allocation2 + $0x30] sm:$0xff]
    %v1491 = vld [vmem:[#allocation2 + $0x38] sm:$0xff]
    %v1492 = vld [vmem:[#allocation2 + $0x40] sm:$0xff]
    %v1493 = vld [vmem:[#allocation2 + $0x48] sm:$0xff]
    %v1494 = vld [vmem:[#allocation2 + $0x50] sm:$0xff]
    %v1495 = vld [vmem:[#allocation2 + $0x58] sm:$0xff]
    %v1496 = vld [vmem:[#allocation2 + $0x60] sm:$0xff]
    %v1497 = vld [vmem:[#allocation2 + $0x68] sm:$0xff]
    %v1498 = vld [vmem:[#allocation2 + $0x70] sm:$0xff]
    %v1499 = vld [vmem:[#allocation2 + $0x78] sm:$0xff]
    %v1500 = vld [vmem:[#allocation2 + $0x80] sm:$0xff]
    %v1501 = vld [vmem:[#allocation2 + $0x88] sm:$0xff]
    %v1502 = vld [vmem:[#allocation2 + $0x90] sm:$0xff]
    %v1503 = vld [vmem:[#allocation2 + $0x98] sm:$0xff]
    %v1504 = vld [vmem:[#allocation2 + $0xa0] sm:$0xff]
    %v1505 = vld [vmem:[#allocation2 + $0xa8] sm:$0xff]
    %v1506 = vld [vmem:[#allocation2 + $0xb0] sm:$0xff]
    %v1507 = vld [vmem:[#allocation2 + $0xb8] sm:$0xff]
    %v1508 = vld [vmem:[#allocation2 + $0xc0] sm:$0xff]
    %v1509 = vld [vmem:[#allocation2 + $0xc8] sm:$0xff]
    %v1510 = vld [vmem:[#allocation2 + $0xd0] sm:$0xff]
    %v1511 = vld [vmem:[#allocation2 + $0xd8] sm:$0xff]
    %v1512 = vld [vmem:[#allocation2 + $0xe0] sm:$0xff]
    %v1513 = vld [vmem:[#allocation2 + $0xe8] sm:$0xff]
    %v1514 = vld [vmem:[#allocation2 + $0xf0] sm:$0xff]
    %v1515 = vld [vmem:[#allocation2 + $0xf8] sm:$0xff]
    %v1516 = vld [vmem:[#allocation2 + $0x100] sm:$0xff]
    %v1517 = vld [vmem:[#allocation2 + $0x108] sm:$0xff]
    %v1518 = vld [vmem:[#allocation2 + $0x110] sm:$0xff]
    %v1519 = vld [vmem:[#allocation2 + $0x118] sm:$0xff]
    %v1520 = vld [vmem:[#allocation2 + $0x120] sm:$0xff]
    %v1521 = vld [vmem:[#allocation2 + $0x128] sm:$0xff]
    %v1522 = vld [vmem:[#allocation2 + $0x130] sm:$0xff]
    %v1523 = vld [vmem:[#allocation2 + $0x138] sm:$0xff]
    %v1524 = vld [vmem:[#allocation2 + $0x140] sm:$0xff]
    %v1525 = vld [vmem:[#allocation2 + $0x148] sm:$0xff]
    %v1526 = vld [vmem:[#allocation2 + $0x150] sm:$0xff]
    %v1527 = vld [vmem:[#allocation2 + $0x158] sm:$0xff]
    %v1528 = vld [vmem:[#allocation2 + $0x160] sm:$0xff]
    %v1529 = vld [vmem:[#allocation2 + $0x168] sm:$0xff]
    %v1530 = vld [vmem:[#allocation2 + $0x170] sm:$0xff]
    %v1531 = vld [vmem:[#allocation2 + $0x178] sm:$0xff]
    %v1532 = vld [vmem:[#allocation3] sm:$0xff]
    %v1533 = vld [vmem:[#allocation3 + $0x8] sm:$0xff]
    %v1534 = vld [vmem:[#allocation3 + $0x10] sm:$0xff]
    %v1535 = vld [vmem:[#allocation3 + $0x18] sm:$0xff]
    %v1536 = vld [vmem:[#allocation3 + $0x20] sm:$0xff]
    %v1537 = vld [vmem:[#allocation3 + $0x28] sm:$0xff]
    %v1538 = vld [vmem:[#allocation3 + $0x30] sm:$0xff]
    %v1539 = vld [vmem:[#allocation3 + $0x38] sm:$0xff]
    %v1540 = vld [vmem:[#allocation3 + $0x40] sm:$0xff]
    %v1541 = vld [vmem:[#allocation3 + $0x48] sm:$0xff]
    %v1542 = vld [vmem:[#allocation3 + $0x50] sm:$0xff]
    %v1543 = vld [vmem:[#allocation3 + $0x58] sm:$0xff]
    %v1544 = vld [vmem:[#allocation3 + $0x60] sm:$0xff]
    %v1545 = vld [vmem:[#allocation3 + $0x68] sm:$0xff]
    %v1546 = vld [vmem:[#allocation3 + $0x70] sm:$0xff]
    %v1547 = vld [vmem:[#allocation3 + $0x78] sm:$0xff]
    %v1548 = vld [vmem:[#allocation3 + $0x80] sm:$0xff]
    %v1549 = vld [vmem:[#allocation3 + $0x88] sm:$0xff]
    %v1550 = vld [vmem:[#allocation3 + $0x90] sm:$0xff]
    %v1551 = vld [vmem:[#allocation3 + $0x98] sm:$0xff]
    %v1552 = vld [vmem:[#allocation3 + $0xa0] sm:$0xff]
    %v1553 = vld [vmem:[#allocation3 + $0xa8] sm:$0xff]
    %v1554 = vld [vmem:[#allocation3 + $0xb0] sm:$0xff]
    %v1555 = vld [vmem:[#allocation3 + $0xb8] sm:$0xff]
    %v1556 = vld [vmem:[#allocation3 + $0xc0] sm:$0xff]
    %v1557 = vld [vmem:[#allocation3 + $0xc8] sm:$0xff]
    %v1558 = vld [vmem:[#allocation3 + $0xd0] sm:$0xff]
    %v1559 = vld [vmem:[#allocation3 + $0xd8] sm:$0xff]
    %v1560 = vld [vmem:[#allocation3 + $0xe0] sm:$0xff]
    %v1561 = vld [vmem:[#allocation3 + $0xe8] sm:$0xff]
    %v1562 = vld [vmem:[#allocation3 + $0xf0] sm:$0xff]
    %v1563 = vld [vmem:[#allocation3 + $0xf8] sm:$0xff]
    %v1564 = vld [vmem:[%s11] sm:$0x1]
    %v1565 = vld [vmem:[%s11 + $0x1] sm:$0x1]
    %v1566 = vld [vmem:[%s11 + $0x2] sm:$0x1]
    %v1567 = vlaneseq
    %v1568 = vshrl.u32 %v1567, 7
    %v1569 = vsub.s32 0, %v1568
    %v1570 = vrot.slane %v1564, %v1569
    %1571 = vmatprep.subr.bf16.mxu0 0
    %1572 = vmatpush1.bf16.msra.mxu0 %v1484
    %1573 = vmatprep.subr.bf16.mxu0 0
    %1574 = vmatpush1.bf16.msra.mxu0 %v1485
    %1575 = vmatprep.subr.bf16.mxu0 0
    %1576 = vmatpush1.bf16.msra.mxu0 %v1486
    %1577 = vmatprep.subr.bf16.mxu0 0
    %1578 = vmatpush1.bf16.msra.mxu0 %v1487
    %1579 = vmatprep.subr.bf16.mxu0 0
    %1580 = vmatpush1.bf16.msra.mxu0 %v1488
    %1581 = vmatprep.subr.bf16.mxu0 0
    %1582 = vmatpush1.bf16.msra.mxu0 %v1489
    %1583 = vmatprep.subr.bf16.mxu0 0
    %1584 = vmatpush1.bf16.msra.mxu0 %v1490
    %1585 = vmatprep.subr.bf16.mxu0 0
    %1586 = vmatpush1.bf16.msra.mxu0 %v1491
    %1587 = vmatprep.subr.bf16.mxu0 0
    %1588 = vmatpush1.bf16.msra.mxu0 %v1492
    %1589 = vmatprep.subr.bf16.mxu0 0
    %1590 = vmatpush1.bf16.msra.mxu0 %v1493
    %1591 = vmatprep.subr.bf16.mxu0 0
    %1592 = vmatpush1.bf16.msra.mxu0 %v1494
    %1593 = vmatprep.subr.bf16.mxu0 0
    %1594 = vmatpush1.bf16.msra.mxu0 %v1495
    %1595 = vmatprep.subr.bf16.mxu0 0
    %1596 = vmatpush1.bf16.msra.mxu0 %v1496
    %1597 = vmatprep.subr.bf16.mxu0 0
    %1598 = vmatpush1.bf16.msra.mxu0 %v1497
    %1599 = vmatprep.subr.bf16.mxu0 0
    %1600 = vmatpush1.bf16.msra.mxu0 %v1498
    %1601 = vmatprep.subr.bf16.mxu0 0
    %1602 = vmatpush1.bf16.msra.mxu0 %v1499
    %1603 = vmatprep.mubr.bf16.mxu0 %v363
    %1604 = vmatmul.mubr.bf16.gmra.mrb[0].mxu0 %v362
    %v1605 = vpop.f32.mrb[0].mxu0
    %v1606 = vadd.f32 %v1570, %v1605
    %v1607 = vpop.f32.mrb[0].mxu0
    %v1608 = vpop.f32.mrb[0].mxu0
    %v1609 = vadd.f32 %v1570, %v1608
    %v1610 = vpop.f32.mrb[0].mxu0
    %1611 = vdwg.mxu0
    %v1612 = vmax.f32 %v1606, 0.0
    %v1613 = vmax.f32 %v1609, 0.0
    %v1614 = vpack.c.bf16 %v1613, %v1612
    %1615 = vmatprep.subr.bf16.mxu0 0
    %1616 = vmatpush1.bf16.msra.mxu0 %v1614
    %1617 = vmatprep.subr.bf16.mxu0 0
    %1618 = vmatpush1.bf16.msra.mxu0 0
    %1619 = vmatprep.subr.bf16.mxu0 0
    %1620 = vmatpush1.bf16.msra.mxu0 0
    %1621 = vmatprep.subr.bf16.mxu0 0
    %1622 = vmatpush1.bf16.msra.mxu0 0
    %1623 = vmatprep.subr.bf16.mxu0 0
    %1624 = vmatpush1.bf16.msra.mxu0 0
    %1625 = vmatprep.subr.bf16.mxu0 0
    %1626 = vmatpush1.bf16.msra.mxu0 0
    %1627 = vmatprep.subr.bf16.mxu0 0
    %1628 = vmatpush1.bf16.msra.mxu0 0
    %1629 = vmatprep.subr.bf16.mxu0 0
    %1630 = vmatpush1.bf16.msra.mxu0 0
    %1631 = vmatprep.subr.bf16.mxu0 0
    %1632 = vmatpush1.bf16.msra.mxu0 0
    %1633 = vmatprep.subr.bf16.mxu0 0
    %1634 = vmatpush1.bf16.msra.mxu0 0
    %1635 = vmatprep.subr.bf16.mxu0 0
    %1636 = vmatpush1.bf16.msra.mxu0 0
    %1637 = vmatprep.subr.bf16.mxu0 0
    %1638 = vmatpush1.bf16.msra.mxu0 0
    %1639 = vmatprep.subr.bf16.mxu0 0
    %1640 = vmatpush1.bf16.msra.mxu0 0
    %1641 = vmatprep.subr.bf16.mxu0 0
    %1642 = vmatpush1.bf16.msra.mxu0 0
    %1643 = vmatprep.subr.bf16.mxu0 0
    %1644 = vmatpush1.bf16.msra.mxu0 0
    %1645 = vmatprep.subr.bf16.mxu0 0
    %1646 = vmatpush1.bf16.msra.mxu0 0
    %1647 = vmatprep.mubr.bf16.mxu0 0
    %1648 = vmatmul.mubr.bf16.gmra.mrb[0].mxu0 %v371
    %v1649 = vpop.f32.mrb[0].mxu0
    %v1650 = vadd.f32 0.0, %v1649
    %v1651 = vpop.f32.mrb[0].mxu0
    %v1652 = vpop.f32.mrb[0].mxu0
    %v1653 = vadd.f32 0.0, %v1652
    %v1654 = vpop.f32.mrb[0].mxu0
    %1655 = vdwg.mxu0
    %v1656 = vpack.c.bf16 %v1650, %v1650
    %v1657 = vpack.c.bf16 %v1653, %v1653
    %1658 = vmatprep.subr.bf16.mxu0 0
    %1659 = vmatpush1.bf16.msra.mxu0 %v1532
    %1660 = vmatprep.subr.bf16.mxu0 0
    %1661 = vmatpush1.bf16.msra.mxu0 %v1533
    %1662 = vmatprep.subr.bf16.mxu0 0
    %1663 = vmatpush1.bf16.msra.mxu0 %v1534
    %1664 = vmatprep.subr.bf16.mxu0 0
    %1665 = vmatpush1.bf16.msra.mxu0 %v1535
    %1666 = vmatprep.subr.bf16.mxu0 0
    %1667 = vmatpush1.bf16.msra.mxu0 %v1536
    %1668 = vmatprep.subr.bf16.mxu0 0
    %1669 = vmatpush1.bf16.msra.mxu0 %v1537
    %1670 = vmatprep.subr.bf16.mxu0 0
    %1671 = vmatpush1.bf16.msra.mxu0 %v1538
    %1672 = vmatprep.subr.bf16.mxu0 0
    %1673 = vmatpush1.bf16.msra.mxu0 %v1539
    %1674 = vmatprep.subr.bf16.mxu0 0
    %1675 = vmatpush1.bf16.msra.mxu0 0
    %1676 = vmatprep.subr.bf16.mxu0 0
    %1677 = vmatpush1.bf16.msra.mxu0 0
    %1678 = vmatprep.subr.bf16.mxu0 0
    %1679 = vmatpush1.bf16.msra.mxu0 0
    %1680 = vmatprep.subr.bf16.mxu0 0
    %1681 = vmatpush1.bf16.msra.mxu0 0
    %1682 = vmatprep.subr.bf16.mxu0 0
    %1683 = vmatpush1.bf16.msra.mxu0 0
    %1684 = vmatprep.subr.bf16.mxu0 0
    %1685 = vmatpush1.bf16.msra.mxu0 0
    %1686 = vmatprep.subr.bf16.mxu0 0
    %1687 = vmatpush1.bf16.msra.mxu0 0
    %1688 = vmatprep.subr.bf16.mxu0 0
    %1689 = vmatpush1.bf16.msra.mxu0 0
    %1690 = vmatprep.mubr.bf16.mxu0 0
    %1691 = vmatmul.mubr.bf16.gmra.mrb[0].mxu0 %v1656
    %v1692 = vpop.f32.mrb[0].mxu0
    %v1693 = vadd.f32 0.0, %v1692
    %v1694 = vpop.f32.mrb[0].mxu0
    %v1695 = vpop.f32.mrb[0].mxu0
    %v1696 = vpop.f32.mrb[0].mxu0
    %1697 = vdwg.mxu0
    %1698 = vmatprep.subr.bf16.mxu0 0
    %1699 = vmatpush1.bf16.msra.mxu0 %v1500
    %1700 = vmatprep.subr.bf16.mxu0 0
    %1701 = vmatpush1.bf16.msra.mxu0 %v1501
    %1702 = vmatprep.subr.bf16.mxu0 0
    %1703 = vmatpush1.bf16.msra.mxu0 %v1502
    %1704 = vmatprep.subr.bf16.mxu0 0
    %1705 = vmatpush1.bf16.msra.mxu0 %v1503
    %1706 = vmatprep.subr.bf16.mxu0 0
    %1707 = vmatpush1.bf16.msra.mxu0 %v1504
    %1708 = vmatprep.subr.bf16.mxu0 0
    %1709 = vmatpush1.bf16.msra.mxu0 %v1505
    %1710 = vmatprep.subr.bf16.mxu0 0
    %1711 = vmatpush1.bf16.msra.mxu0 %v1506
    %1712 = vmatprep.subr.bf16.mxu0 0
    %1713 = vmatpush1.bf16.msra.mxu0 %v1507
    %1714 = vmatprep.subr.bf16.mxu0 0
    %1715 = vmatpush1.bf16.msra.mxu0 %v1508
    %1716 = vmatprep.subr.bf16.mxu0 0
    %1717 = vmatpush1.bf16.msra.mxu0 %v1509
    %1718 = vmatprep.subr.bf16.mxu0 0
    %1719 = vmatpush1.bf16.msra.mxu0 %v1510
    %1720 = vmatprep.subr.bf16.mxu0 0
    %1721 = vmatpush1.bf16.msra.mxu0 %v1511
    %1722 = vmatprep.subr.bf16.mxu0 0
    %1723 = vmatpush1.bf16.msra.mxu0 %v1512
    %1724 = vmatprep.subr.bf16.mxu0 0
    %1725 = vmatpush1.bf16.msra.mxu0 %v1513
    %1726 = vmatprep.subr.bf16.mxu0 0
    %1727 = vmatpush1.bf16.msra.mxu0 %v1514
    %1728 = vmatprep.subr.bf16.mxu0 0
    %1729 = vmatpush1.bf16.msra.mxu0 %v1515
    %1730 = vmatprep.mubr.bf16.mxu0 %v896
    %1731 = vmatmul.mubr.bf16.gmra.mrb[0].mxu0 %v895
    %v1732 = vpop.f32.mrb[0].mxu0
    %v1733 = vadd.f32 %v1693, %v1732
    %v1734 = vpop.f32.mrb[0].mxu0
    %v1735 = vpop.f32.mrb[0].mxu0
    %v1736 = vpop.f32.mrb[0].mxu0
    %1737 = vdwg.mxu0
    %1738 = vmatprep.subr.bf16.mxu0 0
    %1739 = vmatpush1.bf16.msra.mxu0 %v1540
    %1740 = vmatprep.subr.bf16.mxu0 0
    %1741 = vmatpush1.bf16.msra.mxu0 %v1541
    %1742 = vmatprep.subr.bf16.mxu0 0
    %1743 = vmatpush1.bf16.msra.mxu0 %v1542
    %1744 = vmatprep.subr.bf16.mxu0 0
    %1745 = vmatpush1.bf16.msra.mxu0 %v1543
    %1746 = vmatprep.subr.bf16.mxu0 0
    %1747 = vmatpush1.bf16.msra.mxu0 %v1544
    %1748 = vmatprep.subr.bf16.mxu0 0
    %1749 = vmatpush1.bf16.msra.mxu0 %v1545
    %1750 = vmatprep.subr.bf16.mxu0 0
    %1751 = vmatpush1.bf16.msra.mxu0 %v1546
    %1752 = vmatprep.subr.bf16.mxu0 0
    %1753 = vmatpush1.bf16.msra.mxu0 %v1547
    %1754 = vmatprep.subr.bf16.mxu0 0
    %1755 = vmatpush1.bf16.msra.mxu0 0
    %1756 = vmatprep.subr.bf16.mxu0 0
    %1757 = vmatpush1.bf16.msra.mxu0 0
    %1758 = vmatprep.subr.bf16.mxu0 0
    %1759 = vmatpush1.bf16.msra.mxu0 0
    %1760 = vmatprep.subr.bf16.mxu0 0
    %1761 = vmatpush1.bf16.msra.mxu0 0
    %1762 = vmatprep.subr.bf16.mxu0 0
    %1763 = vmatpush1.bf16.msra.mxu0 0
    %1764 = vmatprep.subr.bf16.mxu0 0
    %1765 = vmatpush1.bf16.msra.mxu0 0
    %1766 = vmatprep.subr.bf16.mxu0 0
    %1767 = vmatpush1.bf16.msra.mxu0 0
    %1768 = vmatprep.subr.bf16.mxu0 0
    %1769 = vmatpush1.bf16.msra.mxu0 0
    %1770 = vmatprep.mubr.bf16.mxu0 0
    %1771 = vmatmul.mubr.bf16.gmra.mrb[0].mxu0 %v1657
    %v1772 = vpop.f32.mrb[0].mxu0
    %v1773 = vadd.f32 0.0, %v1772
    %v1774 = vpop.f32.mrb[0].mxu0
    %v1775 = vpop.f32.mrb[0].mxu0
    %v1776 = vpop.f32.mrb[0].mxu0
    %1777 = vdwg.mxu0
    %v1778 = vadd.f32 %v1733, %v1773
    %v1779 = vlaneseq
    %v1780 = vshrl.u32 %v1779, 7
    %v1781 = vsub.s32 0, %v1780
    %v1782 = vrot.slane %v1565, %v1781
    %v1783 = vadd.f32 %v1778, %v1782
    %v1784 = vmax.f32 %v1783, 0.0
    %v1785 = vpack.c.bf16 %v1784, %v1784
    %v1787 = vsel %vm308, %v1785, 0
    %1789 = vmatprep.subr.bf16.mxu0 0
    %1790 = vmatpush1.bf16.msra.mxu0 %v1787
    %1791 = vmatprep.subr.bf16.mxu0 0
    %1792 = vmatpush1.bf16.msra.mxu0 0
    %1793 = vmatprep.subr.bf16.mxu0 0
    %1794 = vmatpush1.bf16.msra.mxu0 0
    %1795 = vmatprep.subr.bf16.mxu0 0
    %1796 = vmatpush1.bf16.msra.mxu0 0
    %1797 = vmatprep.subr.bf16.mxu0 0
    %1798 = vmatpush1.bf16.msra.mxu0 0
    %1799 = vmatprep.subr.bf16.mxu0 0
    %1800 = vmatpush1.bf16.msra.mxu0 0
    %1801 = vmatprep.subr.bf16.mxu0 0
    %1802 = vmatpush1.bf16.msra.mxu0 0
    %1803 = vmatprep.subr.bf16.mxu0 0
    %1804 = vmatpush1.bf16.msra.mxu0 0
    %1805 = vmatprep.subr.bf16.mxu0 0
    %1806 = vmatpush1.bf16.msra.mxu0 0
    %1807 = vmatprep.subr.bf16.mxu0 0
    %1808 = vmatpush1.bf16.msra.mxu0 0
    %1809 = vmatprep.subr.bf16.mxu0 0
    %1810 = vmatpush1.bf16.msra.mxu0 0
    %1811 = vmatprep.subr.bf16.mxu0 0
    %1812 = vmatpush1.bf16.msra.mxu0 0
    %1813 = vmatprep.subr.bf16.mxu0 0
    %1814 = vmatpush1.bf16.msra.mxu0 0
    %1815 = vmatprep.subr.bf16.mxu0 0
    %1816 = vmatpush1.bf16.msra.mxu0 0
    %1817 = vmatprep.subr.bf16.mxu0 0
    %1818 = vmatpush1.bf16.msra.mxu0 0
    %1819 = vmatprep.subr.bf16.mxu0 0
    %1820 = vmatpush1.bf16.msra.mxu0 0
    %1821 = vmatprep.mubr.bf16.mxu0 0
    %1822 = vmatmul.mubr.bf16.gmra.mrb[0].mxu0 %v898
    %v1823 = vpop.f32.mrb[0].mxu0
    %v1824 = vadd.f32 0.0, %v1823
    %v1825 = vpop.f32.mrb[0].mxu0
    %v1826 = vpop.f32.mrb[0].mxu0
    %v1827 = vpop.f32.mrb[0].mxu0
    %1828 = vdwg.mxu0
    %v1829 = vpack.c.bf16 %v1824, %v1824
    %1830 = vmatprep.subr.bf16.mxu0 0
    %1831 = vmatpush1.bf16.msra.mxu0 %v1614
    %1832 = vmatprep.subr.bf16.mxu0 0
    %1833 = vmatpush1.bf16.msra.mxu0 0
    %1834 = vmatprep.subr.bf16.mxu0 0
    %1835 = vmatpush1.bf16.msra.mxu0 0
    %1836 = vmatprep.subr.bf16.mxu0 0
    %1837 = vmatpush1.bf16.msra.mxu0 0
    %1838 = vmatprep.subr.bf16.mxu0 0
    %1839 = vmatpush1.bf16.msra.mxu0 0
    %1840 = vmatprep.subr.bf16.mxu0 0
    %1841 = vmatpush1.bf16.msra.mxu0 0
    %1842 = vmatprep.subr.bf16.mxu0 0
    %1843 = vmatpush1.bf16.msra.mxu0 0
    %1844 = vmatprep.subr.bf16.mxu0 0
    %1845 = vmatpush1.bf16.msra.mxu0 0
    %1846 = vmatprep.subr.bf16.mxu0 0
    %1847 = vmatpush1.bf16.msra.mxu0 0
    %1848 = vmatprep.subr.bf16.mxu0 0
    %1849 = vmatpush1.bf16.msra.mxu0 0
    %1850 = vmatprep.subr.bf16.mxu0 0
    %1851 = vmatpush1.bf16.msra.mxu0 0
    %1852 = vmatprep.subr.bf16.mxu0 0
    %1853 = vmatpush1.bf16.msra.mxu0 0
    %1854 = vmatprep.subr.bf16.mxu0 0
    %1855 = vmatpush1.bf16.msra.mxu0 0
    %1856 = vmatprep.subr.bf16.mxu0 0
    %1857 = vmatpush1.bf16.msra.mxu0 0
    %1858 = vmatprep.subr.bf16.mxu0 0
    %1859 = vmatpush1.bf16.msra.mxu0 0
    %1860 = vmatprep.subr.bf16.mxu0 0
    %1861 = vmatpush1.bf16.msra.mxu0 0
    %1862 = vmatprep.mubr.bf16.mxu0 0
    %1863 = vmatmul.mubr.bf16.gmra.mrb[0].mxu0 %v950
    %v1864 = vpop.f32.mrb[0].mxu0
    %v1865 = vadd.f32 0.0, %v1864
    %v1866 = vpop.f32.mrb[0].mxu0
    %v1867 = vpop.f32.mrb[0].mxu0
    %v1868 = vpop.f32.mrb[0].mxu0
    %1869 = vdwg.mxu0
    %v1870 = vpack.c.bf16 %v1865, %v1865
    %1871 = vmatprep.subr.bf16.mxu0 0
    %1872 = vmatpush1.bf16.msra.mxu0 %v1548
    %1873 = vmatprep.subr.bf16.mxu0 0
    %1874 = vmatpush1.bf16.msra.mxu0 %v1549
    %1875 = vmatprep.subr.bf16.mxu0 0
    %1876 = vmatpush1.bf16.msra.mxu0 %v1550
    %1877 = vmatprep.subr.bf16.mxu0 0
    %1878 = vmatpush1.bf16.msra.mxu0 %v1551
    %1879 = vmatprep.subr.bf16.mxu0 0
    %1880 = vmatpush1.bf16.msra.mxu0 %v1552
    %1881 = vmatprep.subr.bf16.mxu0 0
    %1882 = vmatpush1.bf16.msra.mxu0 %v1553
    %1883 = vmatprep.subr.bf16.mxu0 0
    %1884 = vmatpush1.bf16.msra.mxu0 %v1554
    %1885 = vmatprep.subr.bf16.mxu0 0
    %1886 = vmatpush1.bf16.msra.mxu0 %v1555
    %1887 = vmatprep.subr.bf16.mxu0 0
    %1888 = vmatpush1.bf16.msra.mxu0 0
    %1889 = vmatprep.subr.bf16.mxu0 0
    %1890 = vmatpush1.bf16.msra.mxu0 0
    %1891 = vmatprep.subr.bf16.mxu0 0
    %1892 = vmatpush1.bf16.msra.mxu0 0
    %1893 = vmatprep.subr.bf16.mxu0 0
    %1894 = vmatpush1.bf16.msra.mxu0 0
    %1895 = vmatprep.subr.bf16.mxu0 0
    %1896 = vmatpush1.bf16.msra.mxu0 0
    %1897 = vmatprep.subr.bf16.mxu0 0
    %1898 = vmatpush1.bf16.msra.mxu0 0
    %1899 = vmatprep.subr.bf16.mxu0 0
    %1900 = vmatpush1.bf16.msra.mxu0 0
    %1901 = vmatprep.subr.bf16.mxu0 0
    %1902 = vmatpush1.bf16.msra.mxu0 0
    %1903 = vmatprep.mubr.bf16.mxu0 0
    %1904 = vmatmul.mubr.bf16.gmra.mrb[0].mxu0 %v1829
    %v1905 = vpop.f32.mrb[0].mxu0
    %v1906 = vadd.f32 0.0, %v1905
    %v1907 = vpop.f32.mrb[0].mxu0
    %v1908 = vpop.f32.mrb[0].mxu0
    %v1909 = vpop.f32.mrb[0].mxu0
    %1910 = vdwg.mxu0
    %1911 = vmatprep.subr.bf16.mxu0 0
    %1912 = vmatpush1.bf16.msra.mxu0 %v1516
    %1913 = vmatprep.subr.bf16.mxu0 0
    %1914 = vmatpush1.bf16.msra.mxu0 %v1517
    %1915 = vmatprep.subr.bf16.mxu0 0
    %1916 = vmatpush1.bf16.msra.mxu0 %v1518
    %1917 = vmatprep.subr.bf16.mxu0 0
    %1918 = vmatpush1.bf16.msra.mxu0 %v1519
    %1919 = vmatprep.subr.bf16.mxu0 0
    %1920 = vmatpush1.bf16.msra.mxu0 %v1520
    %1921 = vmatprep.subr.bf16.mxu0 0
    %1922 = vmatpush1.bf16.msra.mxu0 %v1521
    %1923 = vmatprep.subr.bf16.mxu0 0
    %1924 = vmatpush1.bf16.msra.mxu0 %v1522
    %1925 = vmatprep.subr.bf16.mxu0 0
    %1926 = vmatpush1.bf16.msra.mxu0 %v1523
    %1927 = vmatprep.subr.bf16.mxu0 0
    %1928 = vmatpush1.bf16.msra.mxu0 %v1524
    %1929 = vmatprep.subr.bf16.mxu0 0
    %1930 = vmatpush1.bf16.msra.mxu0 %v1525
    %1931 = vmatprep.subr.bf16.mxu0 0
    %1932 = vmatpush1.bf16.msra.mxu0 %v1526
    %1933 = vmatprep.subr.bf16.mxu0 0
    %1934 = vmatpush1.bf16.msra.mxu0 %v1527
    %1935 = vmatprep.subr.bf16.mxu0 0
    %1936 = vmatpush1.bf16.msra.mxu0 %v1528
    %1937 = vmatprep.subr.bf16.mxu0 0
    %1938 = vmatpush1.bf16.msra.mxu0 %v1529
    %1939 = vmatprep.subr.bf16.mxu0 0
    %1940 = vmatpush1.bf16.msra.mxu0 %v1530
    %1941 = vmatprep.subr.bf16.mxu0 0
    %1942 = vmatpush1.bf16.msra.mxu0 %v1531
    %1943 = vmatprep.mubr.bf16.mxu0 %v1471
    %1944 = vmatmul.mubr.bf16.gmra.mrb[0].mxu0 %v1470
    %v1945 = vpop.f32.mrb[0].mxu0
    %v1946 = vadd.f32 %v1906, %v1945
    %v1947 = vpop.f32.mrb[0].mxu0
    %v1948 = vpop.f32.mrb[0].mxu0
    %v1949 = vpop.f32.mrb[0].mxu0
    %1950 = vdwg.mxu0
    %1951 = vmatprep.subr.bf16.mxu0 0
    %1952 = vmatpush1.bf16.msra.mxu0 %v1556
    %1953 = vmatprep.subr.bf16.mxu0 0
    %1954 = vmatpush1.bf16.msra.mxu0 %v1557
    %1955 = vmatprep.subr.bf16.mxu0 0
    %1956 = vmatpush1.bf16.msra.mxu0 %v1558
    %1957 = vmatprep.subr.bf16.mxu0 0
    %1958 = vmatpush1.bf16.msra.mxu0 %v1559
    %1959 = vmatprep.subr.bf16.mxu0 0
    %1960 = vmatpush1.bf16.msra.mxu0 %v1560
    %1961 = vmatprep.subr.bf16.mxu0 0
    %1962 = vmatpush1.bf16.msra.mxu0 %v1561
    %1963 = vmatprep.subr.bf16.mxu0 0
    %1964 = vmatpush1.bf16.msra.mxu0 %v1562
    %1965 = vmatprep.subr.bf16.mxu0 0
    %1966 = vmatpush1.bf16.msra.mxu0 %v1563
    %1967 = vmatprep.subr.bf16.mxu0 0
    %1968 = vmatpush1.bf16.msra.mxu0 0
    %1969 = vmatprep.subr.bf16.mxu0 0
    %1970 = vmatpush1.bf16.msra.mxu0 0
    %1971 = vmatprep.subr.bf16.mxu0 0
    %1972 = vmatpush1.bf16.msra.mxu0 0
    %1973 = vmatprep.subr.bf16.mxu0 0
    %1974 = vmatpush1.bf16.msra.mxu0 0
    %1975 = vmatprep.subr.bf16.mxu0 0
    %1976 = vmatpush1.bf16.msra.mxu0 0
    %1977 = vmatprep.subr.bf16.mxu0 0
    %1978 = vmatpush1.bf16.msra.mxu0 0
    %1979 = vmatprep.subr.bf16.mxu0 0
    %1980 = vmatpush1.bf16.msra.mxu0 0
    %1981 = vmatprep.subr.bf16.mxu0 0
    %1982 = vmatpush1.bf16.msra.mxu0 0
    %1983 = vmatprep.mubr.bf16.mxu0 0
    %1984 = vmatmul.mubr.bf16.gmra.mrb[0].mxu0 %v1870
    %v1985 = vpop.f32.mrb[0].mxu0
    %v1986 = vadd.f32 0.0, %v1985
    %v1987 = vpop.f32.mrb[0].mxu0
    %v1988 = vpop.f32.mrb[0].mxu0
    %v1989 = vpop.f32.mrb[0].mxu0
    %1990 = vdwg.mxu0
    %v1991 = vadd.f32 %v1946, %v1986
    %v1992 = vlaneseq
    %v1993 = vshrl.u32 %v1992, 7
    %v1994 = vsub.s32 0, %v1993
    %v1995 = vrot.slane %v1566, %v1994
    %v1996 = vadd.f32 %v1991, %v1995
    %v1997 = vmax.f32 %v1996, 0.0
    %v1998 = vpack.c.bf16 %v1997, %v1997
    %v1999 = vld [vmem:[#allocation4] sm:$0xff]
    %v2000 = vld [vmem:[#allocation4 + $0x8] sm:$0xff]
    %v2001 = vld [vmem:[#allocation4 + $0x10] sm:$0xff]
    %v2002 = vld [vmem:[#allocation4 + $0x18] sm:$0xff]
    %v2003 = vld [vmem:[#allocation4 + $0x20] sm:$0xff]
    %v2004 = vld [vmem:[#allocation4 + $0x28] sm:$0xff]
    %v2005 = vld [vmem:[#allocation4 + $0x30] sm:$0xff]
    %v2006 = vld [vmem:[#allocation4 + $0x38] sm:$0xff]
    %v2007 = vld [vmem:[%s12] sm:$0x1]
    %v2009 = vlaneseq
    %v2010 = vshrl.u32 %v2009, 7
    %v2011 = vsub.s32 0, %v2010
    %v2012 = vrot.slane %v2007, %v2011
    %2014 = vmatprep.subr.bf16.mxu0 0
    %2015 = vmatpush1.bf16.msra.mxu0 %v1999
    %2016 = vmatprep.subr.bf16.mxu0 0
    %2017 = vmatpush1.bf16.msra.mxu0 %v2000
    %2018 = vmatprep.subr.bf16.mxu0 0
    %2019 = vmatpush1.bf16.msra.mxu0 %v2001
    %2020 = vmatprep.subr.bf16.mxu0 0
    %2021 = vmatpush1.bf16.msra.mxu0 %v2002
    %2022 = vmatprep.subr.bf16.mxu0 0
    %2023 = vmatpush1.bf16.msra.mxu0 %v2003
    %2024 = vmatprep.subr.bf16.mxu0 0
    %2025 = vmatpush1.bf16.msra.mxu0 %v2004
    %2026 = vmatprep.subr.bf16.mxu0 0
    %2027 = vmatpush1.bf16.msra.mxu0 %v2005
    %2028 = vmatprep.subr.bf16.mxu0 0
    %2029 = vmatpush1.bf16.msra.mxu0 %v2006
    %2030 = vmatprep.subr.bf16.mxu0 0
    %2031 = vmatpush1.bf16.msra.mxu0 0
    %2032 = vmatprep.subr.bf16.mxu0 0
    %2033 = vmatpush1.bf16.msra.mxu0 0
    %2034 = vmatprep.subr.bf16.mxu0 0
    %2035 = vmatpush1.bf16.msra.mxu0 0
    %2036 = vmatprep.subr.bf16.mxu0 0
    %2037 = vmatpush1.bf16.msra.mxu0 0
    %2038 = vmatprep.subr.bf16.mxu0 0
    %2039 = vmatpush1.bf16.msra.mxu0 0
    %2040 = vmatprep.subr.bf16.mxu0 0
    %2041 = vmatpush1.bf16.msra.mxu0 0
    %2042 = vmatprep.subr.bf16.mxu0 0
    %2043 = vmatpush1.bf16.msra.mxu0 0
    %2044 = vmatprep.subr.bf16.mxu0 0
    %2045 = vmatpush1.bf16.msra.mxu0 0
    %2046 = vmatprep.mubr.bf16.mxu0 0
    %2047 = vmatmul.mubr.bf16.gmra.mrb[0].mxu0 %v1998
    %v2048 = vpop.f32.mrb[0].mxu0
    %v2049 = vadd.f32 %v2012, %v2048
    %v2050 = vpop.f32.mrb[0].mxu0
    %v2051 = vpop.f32.mrb[0].mxu0
    %v2052 = vpop.f32.mrb[0].mxu0
    %2053 = vdwg.mxu0
    %v2054 = vlaneseq
    %v2055 = vand.u32 %v2054, 127
    %v2056 = vmax.f32 %v2049, -20.0
    %v2057 = vmin.f32 %v2056, 2.0
    %vm2058 = vcmp.ge.s32.totalorder %v2055, 4
    %v2059 = vsel %vm2058, %v2057, %v2049
    %vm2060 = vcmask 58368
    %2061 = vst.msk [vmem:[#allocation9] sm:$0x3] %vm2060, %v2059
    // Predicated region
    $region100: #{tpu_custom_call.1} parent=1 // pred_check
      _
    $region101: #{tpu_custom_call.1} parent=1 // pred_check_branch
      %2063 = sbr.rel (0) target = $region103
    $region102: #{tpu_custom_call.1} parent=1 // pred_region
      %s2065 = ssub.s32 32, 32
      %2066 = vsyncadd [#allocation8], %s2065
      %s2068 = sshll.u32 [#allocation9], 4
      %s2069 = int_to_ptr.vmem [resolvable:$true] %s2068
      %2071 = dma.vmem_to_hbm [thread:$0]  %s2069, 32, %s16, [#allocation8]
    $region103: #{tpu_custom_call.1} parent=1 // pred_fallthru
      _
    // Predicated region
    $region104: #{tpu_custom_call.1} parent=1 // pred_check
      _
    $region105: #{tpu_custom_call.1} parent=1 // pred_check_branch
      %2073 = sbr.rel (0) target = $region107
    $region106: #{tpu_custom_call.1} parent=1 // pred_region
      %2074 = dma.done [#allocation8], 32
    $region107: #{tpu_custom_call.1} parent=1 // pred_fallthru
      _
    %2075 = vsyncpa [#allocation7], 1
    %2076 = vsyncpa [#allocation8], 1
  %2077 = vsyncmov [#allocation5]
  %s2078 = vpop.sfrf %2077
  %p2079 = scmp.eq.s32.totalorder %s2078, 0
  %p2080 = pneg %p2079
  %2082 = shalt.err (%p2080)
  %s2083 = scalar_lea.sflag [#allocation5], 1
  %2084 = vsyncmov %s2083
  %s2085 = vpop.sfrf %2084
  %p2086 = scmp.eq.s32.totalorder %s2085, 0
  %p2087 = pneg %p2086
  %2089 = shalt.err (%p2087)
  %s2090 = scalar_lea.sflag [#allocation5], 2
  %2091 = vsyncmov %s2090
  %s2092 = vpop.sfrf %2091
  %p2093 = scmp.eq.s32.totalorder %s2092, 0
  %p2094 = pneg %p2093
  %2096 = shalt.err (%p2094)

</llo_original>
